<compile_context>
chip_gen: v6e
topology: v6e:2x2x1
jax: 0.10.0
libtpu: 0.0.40
codegen_flags: <defaults>
</compile_context>

<pallas_src>
import functools

import jax
import jax.numpy as jnp
from jax import lax
from jax.experimental import pallas as pl
from jax.experimental.pallas import tpu as pltpu

INF = 1e20
NEG_BIG = -2e20  # strictly below -INF so already-masked entries stay "kept as -INF"
LANE = 128


def _graph_learner_kernel(ctx_ref, mrow_ref, mcol_ref, wt_ref, out_ref, *, topk):
    # ctx_ref:  (Bt, Sp, D)   bf16 context tile (batch-tiled)
    # mrow_ref: (Bt, 1, Sp)   key-axis mask   (f32 0/1, broadcast over rows)
    # mcol_ref: (Bt, Sp, 1)   query-axis mask (f32 0/1, broadcast over cols)
    # wt_ref:   (D, H)        W_sim^T (bf16, constant across the grid)
    # out_ref:  (Bt, Sp, Sp)  f32 adjacency tile
    bt, sp, d = ctx_ref.shape
    h = wt_ref.shape[1]

    # --- linear (no bias) + ReLU: one big (Bt*Sp, D) @ (D, H) MXU call ---------
    ctx = ctx_ref[...].reshape(bt * sp, d)                       # bf16, no-op reshape
    cf = jnp.maximum(
        jnp.dot(ctx, wt_ref[...], preferred_element_type=jnp.float32), 0.0
    )                                                            # (Bt*Sp, H) f32
    cf = cf.astype(ctx_ref.dtype).reshape(bt, sp, h)             # bf16 for 2nd matmul

    # --- batched self-similarity cf @ cf^T (contract feature dim) --------------
    att = jnp.einsum("bih,bjh->bij", cf, cf,
                     preferred_element_type=jnp.float32)         # (Bt, Sp, Sp) f32

    # --- mask invalid keys (columns) and queries (rows) ------------------------
    att = jnp.where(mrow_ref[...] > 0.5, att, -INF)              # (Bt,1,Sp) broadcast
    att = jnp.where(mcol_ref[...] > 0.5, att, -INF)              # (Bt,Sp,1) broadcast

    # Park the masked similarities in VMEM so only the knockout copy stays live
    # (halves the live (Bt,Sp,Sp) state during the top-k passes).
    out_ref[...] = att

    # --- k-th-largest-per-row threshold via knockout passes --------------------
    # k-1 knockout passes, then one final row-max = k-th largest (the knockout of
    # the last pass in the previous version was dead work and is removed).
    cur = att
    if topk <= 32:
        # static k -> fully unrolled so the scheduler interleaves the XLU row-max
        # with the VPU knockout/compare of the next pass
        for _ in range(topk - 1):
            m = jnp.max(cur, axis=-1, keepdims=True)             # (Bt, Sp, 1)
            cur = jnp.where(cur >= m, NEG_BIG, cur)
    else:
        def body(_, c):
            m = jnp.max(c, axis=-1, keepdims=True)
            return jnp.where(c >= m, NEG_BIG, c)
        cur = lax.fori_loop(0, topk - 1, body, cur)
    thr = jnp.max(cur, axis=-1, keepdims=True)                   # (Bt, Sp, 1)

    # Keep top-k values per row, fill the rest with -INF (torch scatter of -INF).
    att = out_ref[...]
    out_ref[...] = jnp.where(att >= thr, att, -INF)


def _vmem_capacity_bytes():
    try:
        return int(pltpu.get_tpu_info().vmem_capacity_bytes)
    except Exception:
        return 64 * 1024 * 1024  # conservative fallback (v7x physical VMEM)


def _pick_batch_tile(b, sp, d, h, budget_bytes):
    """Batch elements per grid step, sized to the available VMEM budget."""
    per_b = (
        2 * sp * d * 2              # ctx block (bf16), double-buffered
        + 2 * sp * sp * 4           # output block (f32), double-buffered
        + 2 * sp * sp * 4           # att + knockout copy (f32), worst case in VMEM
        + 2 * (sp * LANE + 8 * sp) * 4  # mask blocks (lane/sublane padded), dbl-buffered
        + sp * h * 4                # cf intermediate
    )
    cap = max(1, budget_bytes // per_b)
    want = max(1, -(-256 // sp))    # enough MXU rows for the 256-row array (v6e/v7x)
    return max(1, min(b, cap, max(want, 8)))


def graph_learner_forward(context, ctx_mask, w_sim, topk, *,
                          matmul_dtype=jnp.bfloat16):
    """context: (B, S, D); ctx_mask: (B, S) 0/1; w_sim: (H, D). Returns (B, S, S) f32."""
    B, S, D = context.shape
    H = w_sim.shape[0]
    k = max(1, min(int(topk), S))

    # Pad S to a lane multiple -> lane-dense (Sp, Sp) output stores; padded
    # positions carry mask=0 so they come out -INF and are sliced off below.
    Sp = ((S + LANE - 1) // LANE) * LANE

    vmem_cap = _vmem_capacity_bytes()
    vmem_limit = int(min(vmem_cap * 3 // 4, 100 * 1024 * 1024))
    bt = _pick_batch_tile(B, Sp, D, H, budget_bytes=vmem_limit // 2)
    Bp = ((B + bt - 1) // bt) * bt

    ctx = jnp.zeros((Bp, Sp, D), matmul_dtype).at[:B, :S, :].set(
        context.astype(matmul_dtype))
    m = jnp.asarray(ctx_mask, jnp.float32)
    mrow = jnp.zeros((Bp, 1, Sp), jnp.float32).at[:B, 0, :S].set(m)
    mcol = jnp.zeros((Bp, Sp, 1), jnp.float32).at[:B, :S, 0].set(m)
    wt = jnp.asarray(w_sim).astype(matmul_dtype).T                # (D, H)

    kernel = functools.partial(_graph_learner_kernel, topk=k)

    out = pl.pallas_call(
        kernel,
        out_shape=jax.ShapeDtypeStruct((Bp, Sp, Sp), jnp.float32),
        grid_spec=pltpu.PrefetchScalarGridSpec(
            num_scalar_prefetch=0,
            grid=(Bp // bt,),
            in_specs=[
                pl.BlockSpec((bt, Sp, D), lambda b: (b, 0, 0)),
                pl.BlockSpec((bt, 1, Sp), lambda b: (b, 0, 0)),
                pl.BlockSpec((bt, Sp, 1), lambda b: (b, 0, 0)),
                # Constant index_map -> weight tile is fetched once, not per step.
                pl.BlockSpec((D, H), lambda b: (0, 0)),
            ],
            out_specs=pl.BlockSpec((bt, Sp, Sp), lambda b: (b, 0, 0)),
        ),
        compiler_params=pltpu.CompilerParams(
            dimension_semantics=("parallel",),   # batch axis shards across TCs (v7x)
            vmem_limit_bytes=vmem_limit,
        ),
    )(ctx, mrow, mcol, wt)

    return out[:B, :S, :S]


def _reference(context, ctx_mask, w_sim, topk, matmul_dtype=jnp.float32):
    ctx = context.astype(matmul_dtype)
    w = jnp.asarray(w_sim).astype(matmul_dtype)
    cf = jax.nn.relu(
        jnp.einsum("bsd,hd->bsh", ctx, w, preferred_element_type=jnp.float32))
    cf = cf.astype(matmul_dtype)
    att = jnp.einsum("bih,bjh->bij", cf, cf, preferred_element_type=jnp.float32)
    att = jnp.where(ctx_mask[:, None, :] > 0, att, -INF)
    att = jnp.where(ctx_mask[:, :, None] > 0, att, -INF)
    k = min(topk, att.shape[-1])
    vals, _ = lax.top_k(att, k)
    thr = vals[..., -1:]
    return jnp.where(att >= thr, att, -INF)


if __name__ == "__main__":
    key = jax.random.PRNGKey(0)
    B, S, D, H = 2, 16, 32, 32
    TOPK = 5

    k1, k2, k3 = jax.random.split(key, 3)
    context = jax.random.normal(k1, (B, S, D), dtype=jnp.float32)
    # deterministic mask with a few padded (zero) positions per batch element
    ctx_mask = (jax.random.uniform(k2, (B, S)) > 0.2).astype(jnp.float32)
    # weights of nn.Linear(input_size, hidden_size, bias=False)
    w_sim = jax.random.normal(k3, (H, D), dtype=jnp.float32) * 0.1

    out = graph_learner_forward(context, ctx_mask, w_sim, TOPK)
    out = jax.block_until_ready(out)

    # Reference applies the same bf16 matmul rounding as the kernel.
    ref = _reference(context, ctx_mask, w_sim, TOPK, matmul_dtype=jnp.bfloat16)
    assert out.shape == (B, S, S)
    assert jnp.allclose(out, ref, rtol=5e-2, atol=5e-2), "mismatch vs reference"

    print("KERNEL_OK")
</pallas_src>

<mosaic_0001>
module attributes {stable_mosaic.version = 11 : i64} {
  func.func @_graph_learner_kernel(%arg0: i32, %arg1: memref<2x128x32xbf16, #tpu.memory_space<vmem>>, %arg2: memref<2x1x128xf32, #tpu.memory_space<vmem>>, %arg3: memref<2x128x1xf32, #tpu.memory_space<vmem>>, %arg4: memref<32x32xbf16, #tpu.memory_space<vmem>>, %arg5: memref<2x128x128xf32, #tpu.memory_space<vmem>>) attributes {dimension_semantics = [#tpu.dimension_semantics<parallel>], iteration_bounds = array<i64: 1>, scalar_prefetch = 0 : i64, scratch_operands = 0 : i64, tpu.core_type = #tpu.core_type<tc>, window_params = [{transform_indices = @transform_0, window_bounds = array<i64: 2, 128, 32>}, {transform_indices = @transform_1, window_bounds = array<i64: 2, 1, 128>}, {transform_indices = @transform_2, window_bounds = array<i64: 2, 128, 1>}, {pipeline_mode = #tpu.pipeline_mode<synchronous>, transform_indices = @transform_3, window_bounds = array<i64: 32, 32>}, {transform_indices = @transform_4, window_bounds = array<i64: 2, 128, 128>}]} {
    %c0 = arith.constant 0 : index
    %c0_0 = arith.constant 0 : index
    %c0_1 = arith.constant 0 : index
    %0 = vector.load %arg1[%c0, %c0_0, %c0_1] : memref<2x128x32xbf16, #tpu.memory_space<vmem>>, vector<2x128x32xbf16>
    %1 = vector.shape_cast %0 : vector<2x128x32xbf16> to vector<256x32xbf16>
    %c0_2 = arith.constant 0 : index
    %c0_3 = arith.constant 0 : index
    %2 = vector.load %arg4[%c0_2, %c0_3] : memref<32x32xbf16, #tpu.memory_space<vmem>>, vector<32x32xbf16>
    %cst = arith.constant dense<0.000000e+00> : vector<256x32xf32>
    %3 = tpu.matmul %1, %2, %cst {dimension_numbers = #tpu.dot_dimension_numbers<[1], [0], [0], [1], [0, 0, 1, 1], [], []>} : vector<256x32xbf16>, vector<32x32xbf16>, vector<256x32xf32> -> vector<256x32xf32>
    %cst_4 = arith.constant 0.000000e+00 : f32
    %4 = vector.broadcast %cst_4 : f32 to vector<256x32xf32>
    %5 = arith.maximumf %3, %4 : vector<256x32xf32>
    %6 = arith.truncf %5 : vector<256x32xf32> to vector<256x32xbf16>
    %7 = vector.shape_cast %6 : vector<256x32xbf16> to vector<2x128x32xbf16>
    "tpu.trace_start"() <{level = 10 : i32, message = "bih,bjh->bij"}> : () -> ()
    %cst_5 = arith.constant dense<0.000000e+00> : vector<2x128x128xf32>
    %8 = tpu.matmul %7, %7, %cst_5 {dimension_numbers = #tpu.dot_dimension_numbers<[2], [2], [1], [1], [0, 0, 0, 1, 1, 1], [0], [0]>} : vector<2x128x32xbf16>, vector<2x128x32xbf16>, vector<2x128x128xf32> -> vector<2x128x128xf32>
    "tpu.trace_stop"() : () -> ()
    %c0_6 = arith.constant 0 : index
    %c0_7 = arith.constant 0 : index
    %c0_8 = arith.constant 0 : index
    %9 = vector.load %arg2[%c0_6, %c0_7, %c0_8] : memref<2x1x128xf32, #tpu.memory_space<vmem>>, vector<2x1x128xf32>
    %cst_9 = arith.constant 5.000000e-01 : f32
    %10 = vector.broadcast %cst_9 : f32 to vector<2x1x128xf32>
    %11 = arith.cmpf ogt, %9, %10 : vector<2x1x128xf32>
    %cst_10 = arith.constant -1.000000e+20 : f32
    %12 = vector.shape_cast %11 : vector<2x1x128xi1> to vector<2x1x128xi1>
    %13 = vector.broadcast %12 : vector<2x1x128xi1> to vector<2x128x128xi1>
    %14 = vector.broadcast %cst_10 : f32 to vector<2x128x128xf32>
    %15 = arith.select %13, %8, %14 : vector<2x128x128xi1>, vector<2x128x128xf32>
    %c0_11 = arith.constant 0 : index
    %c0_12 = arith.constant 0 : index
    %c0_13 = arith.constant 0 : index
    %16 = vector.load %arg3[%c0_11, %c0_12, %c0_13] : memref<2x128x1xf32, #tpu.memory_space<vmem>>, vector<2x128x1xf32>
    %cst_14 = arith.constant 5.000000e-01 : f32
    %17 = vector.broadcast %cst_14 : f32 to vector<2x128x1xf32>
    %18 = arith.cmpf ogt, %16, %17 : vector<2x128x1xf32>
    %cst_15 = arith.constant -1.000000e+20 : f32
    %19 = vector.shape_cast %18 : vector<2x128x1xi1> to vector<2x128x1xi1>
    %20 = vector.broadcast %19 : vector<2x128x1xi1> to vector<2x128x128xi1>
    %21 = vector.broadcast %cst_15 : f32 to vector<2x128x128xf32>
    %22 = arith.select %20, %15, %21 : vector<2x128x128xi1>, vector<2x128x128xf32>
    %c0_16 = arith.constant 0 : index
    %c0_17 = arith.constant 0 : index
    %c0_18 = arith.constant 0 : index
    %23 = vector.load %arg5[%c0_16, %c0_17, %c0_18] : memref<2x128x128xf32, #tpu.memory_space<vmem>>, vector<2x128x128xf32>
    tpu.vector_store %arg5[%c0_16, %c0_17, %c0_18], %22 {strides = array<i32>} : memref<2x128x128xf32, #tpu.memory_space<vmem>>, vector<2x128x128xf32>,
    %cst_19 = arith.constant dense<0xFF800000> : vector<2x128xf32>
    %24 = vector.multi_reduction <maximumf>, %22, %cst_19 [2] : vector<2x128x128xf32> to vector<2x128xf32>
    %25 = vector.shape_cast %24 : vector<2x128xf32> to vector<2x128x1xf32>
    %26 = vector.broadcast %25 : vector<2x128x1xf32> to vector<2x128x128xf32>
    %27 = arith.cmpf oge, %22, %26 : vector<2x128x128xf32>
    %cst_20 = arith.constant -2.000000e+20 : f32
    %28 = vector.broadcast %cst_20 : f32 to vector<2x128x128xf32>
    %29 = arith.select %27, %28, %22 : vector<2x128x128xi1>, vector<2x128x128xf32>
    %cst_21 = arith.constant dense<0xFF800000> : vector<2x128xf32>
    %30 = vector.multi_reduction <maximumf>, %29, %cst_21 [2] : vector<2x128x128xf32> to vector<2x128xf32>
    %31 = vector.shape_cast %30 : vector<2x128xf32> to vector<2x128x1xf32>
    %32 = vector.broadcast %31 : vector<2x128x1xf32> to vector<2x128x128xf32>
    %33 = arith.cmpf oge, %29, %32 : vector<2x128x128xf32>
    %cst_22 = arith.constant -2.000000e+20 : f32
    %34 = vector.broadcast %cst_22 : f32 to vector<2x128x128xf32>
    %35 = arith.select %33, %34, %29 : vector<2x128x128xi1>, vector<2x128x128xf32>
    %cst_23 = arith.constant dense<0xFF800000> : vector<2x128xf32>
    %36 = vector.multi_reduction <maximumf>, %35, %cst_23 [2] : vector<2x128x128xf32> to vector<2x128xf32>
    %37 = vector.shape_cast %36 : vector<2x128xf32> to vector<2x128x1xf32>
    %38 = vector.broadcast %37 : vector<2x128x1xf32> to vector<2x128x128xf32>
    %39 = arith.cmpf oge, %35, %38 : vector<2x128x128xf32>
    %cst_24 = arith.constant -2.000000e+20 : f32
    %40 = vector.broadcast %cst_24 : f32 to vector<2x128x128xf32>
    %41 = arith.select %39, %40, %35 : vector<2x128x128xi1>, vector<2x128x128xf32>
    %cst_25 = arith.constant dense<0xFF800000> : vector<2x128xf32>
    %42 = vector.multi_reduction <maximumf>, %41, %cst_25 [2] : vector<2x128x128xf32> to vector<2x128xf32>
    %43 = vector.shape_cast %42 : vector<2x128xf32> to vector<2x128x1xf32>
    %44 = vector.broadcast %43 : vector<2x128x1xf32> to vector<2x128x128xf32>
    %45 = arith.cmpf oge, %41, %44 : vector<2x128x128xf32>
    %cst_26 = arith.constant -2.000000e+20 : f32
    %46 = vector.broadcast %cst_26 : f32 to vector<2x128x128xf32>
    %47 = arith.select %45, %46, %41 : vector<2x128x128xi1>, vector<2x128x128xf32>
    %cst_27 = arith.constant dense<0xFF800000> : vector<2x128xf32>
    %48 = vector.multi_reduction <maximumf>, %47, %cst_27 [2] : vector<2x128x128xf32> to vector<2x128xf32>
    %49 = vector.shape_cast %48 : vector<2x128xf32> to vector<2x128x1xf32>
    %c0_28 = arith.constant 0 : index
    %c0_29 = arith.constant 0 : index
    %c0_30 = arith.constant 0 : index
    %50 = vector.load %arg5[%c0_28, %c0_29, %c0_30] : memref<2x128x128xf32, #tpu.memory_space<vmem>>, vector<2x128x128xf32>
    %51 = vector.broadcast %49 : vector<2x128x1xf32> to vector<2x128x128xf32>
    %52 = arith.cmpf oge, %50, %51 : vector<2x128x128xf32>
    %cst_31 = arith.constant -1.000000e+20 : f32
    %53 = vector.broadcast %cst_31 : f32 to vector<2x128x128xf32>
    %54 = arith.select %52, %50, %53 : vector<2x128x128xi1>, vector<2x128x128xf32>
    %c0_32 = arith.constant 0 : index
    %c0_33 = arith.constant 0 : index
    %c0_34 = arith.constant 0 : index
    %55 = vector.load %arg5[%c0_32, %c0_33, %c0_34] : memref<2x128x128xf32, #tpu.memory_space<vmem>>, vector<2x128x128xf32>
    tpu.vector_store %arg5[%c0_32, %c0_33, %c0_34], %54 {strides = array<i32>} : memref<2x128x128xf32, #tpu.memory_space<vmem>>, vector<2x128x128xf32>,
    return
  }
  func.func @transform_0(%arg0: i32) -> (i32, i32, i32) {
    %c0_i32 = arith.constant 0 : i32
    %c0_i32_0 = arith.constant 0 : i32
    %c0_i32_1 = arith.constant 0 : i32
    return %arg0, %c0_i32, %c0_i32_0 : i32, i32, i32
  }
  func.func @transform_1(%arg0: i32) -> (i32, i32, i32) {
    %c0_i32 = arith.constant 0 : i32
    %c0_i32_0 = arith.constant 0 : i32
    %c0_i32_1 = arith.constant 0 : i32
    return %arg0, %c0_i32, %c0_i32_0 : i32, i32, i32
  }
  func.func @transform_2(%arg0: i32) -> (i32, i32, i32) {
    %c0_i32 = arith.constant 0 : i32
    %c0_i32_0 = arith.constant 0 : i32
    %c0_i32_1 = arith.constant 0 : i32
    return %arg0, %c0_i32, %c0_i32_0 : i32, i32, i32
  }
  func.func @transform_3(%arg0: i32) -> (i32, i32) {
    %c0_i32 = arith.constant 0 : i32
    %c0_i32_0 = arith.constant 0 : i32
    %c0_i32_1 = arith.constant 0 : i32
    return %c0_i32, %c0_i32_0 : i32, i32
  }
  func.func @transform_4(%arg0: i32) -> (i32, i32, i32) {
    %c0_i32 = arith.constant 0 : i32
    %c0_i32_0 = arith.constant 0 : i32
    %c0_i32_1 = arith.constant 0 : i32
    return %arg0, %c0_i32, %c0_i32_0 : i32, i32, i32
  }
}

</mosaic_0001>

<llo_original>
// kernel: tpu_custom_call.1
$region0: #{tpu_custom_call.1}
  #allocation0 [shape = 'u32[]', space=smem, size = 0x4, offset = 0x4, fixed_abs, tag = 'smem constant byte address 0x4 - core index']
  #allocation1 [shape = 'u32[144,128]{1,0:T(1,128)}', space=vmem, size = 0x12000, scoped, tag = 'internal scratch']
  %s0 = inlined_call_operand.vmem [shape: bf16[2,128,32], index: 0, kind: input, shape index: {}]
  %s1 = inlined_call_operand.vmem [shape: f32[2,1,128], index: 1, kind: input, shape index: {}]
  %s2 = inlined_call_operand.vmem [shape: f32[2,128,1], index: 2, kind: input, shape index: {}]
  %s3 = inlined_call_operand.vmem [shape: bf16[32,32], index: 3, kind: input, shape index: {}]
  %s4 = inlined_call_operand.hbm [shape: f32[2,128,128], index: 4, kind: output, shape index: {}]
  %s5 = sld [smem:[#allocation0]]
  $region26: #{tpu_custom_call.1} parent=0
    _
  %s7 = ssub.s32 1, %s5
  %s8 = scalar_select 0, %s7, %s5
  $region1: #{tpu_custom_call.1} parent=0
    #allocation2 [shape = 'u8[131072]{0}', space=vmem, size = 0x20000, scoped, tag = 'output window, operand 0, single buffered']
    #allocation3 [shape = 's32[1]{0}', space=sflag, size = 0x4, scoped, tag = 'scoped memory for tpu_custom_call.1']
    %9 = vsyncpa [#allocation3], 0
    // Predicated region
    $region2: #{tpu_custom_call.1} parent=1 // pred_check
      _
    $region3: #{tpu_custom_call.1} parent=1 // pred_check_branch
      %11 = sbr.rel (0) target = $region5
    $region4: #{tpu_custom_call.1} parent=1 // pred_region
      _
    $region5: #{tpu_custom_call.1} parent=1 // pred_fallthru
      _
    // Predicated region
    $region6: #{tpu_custom_call.1} parent=1 // pred_check
      _
    $region7: #{tpu_custom_call.1} parent=1 // pred_check_branch
      %13 = sbr.rel (0) target = $region9
    $region8: #{tpu_custom_call.1} parent=1 // pred_region
      _
    $region9: #{tpu_custom_call.1} parent=1 // pred_fallthru
      _
    // Predicated region
    $region10: #{tpu_custom_call.1} parent=1 // pred_check
      _
    $region11: #{tpu_custom_call.1} parent=1 // pred_check_branch
      %15 = sbr.rel (0) target = $region13
    $region12: #{tpu_custom_call.1} parent=1 // pred_region
      _
    $region13: #{tpu_custom_call.1} parent=1 // pred_fallthru
      _
    // Predicated region
    $region14: #{tpu_custom_call.1} parent=1 // pred_check
      _
    $region15: #{tpu_custom_call.1} parent=1 // pred_check_branch
      %17 = sbr.rel (0) target = $region17
    $region16: #{tpu_custom_call.1} parent=1 // pred_region
      _
    $region17: #{tpu_custom_call.1} parent=1 // pred_fallthru
      _
    %v19 = vld [vmem:[%s0] sm:$0xf]
    %v20 = vld [vmem:[%s0 + $0x4] sm:$0xf]
    %v21 = vld [vmem:[%s0 + $0x8] sm:$0xf]
    %v22 = vld [vmem:[%s0 + $0xc] sm:$0xf]
    %v23 = vld [vmem:[%s0 + $0x10] sm:$0xf]
    %v24 = vld [vmem:[%s0 + $0x14] sm:$0xf]
    %v25 = vld [vmem:[%s0 + $0x18] sm:$0xf]
    %v26 = vld [vmem:[%s0 + $0x1c] sm:$0xf]
    %v27 = vld [vmem:[%s0 + $0x20] sm:$0xf]
    %v28 = vld [vmem:[%s0 + $0x24] sm:$0xf]
    %v29 = vld [vmem:[%s0 + $0x28] sm:$0xf]
    %v30 = vld [vmem:[%s0 + $0x2c] sm:$0xf]
    %v31 = vld [vmem:[%s0 + $0x30] sm:$0xf]
    %v32 = vld [vmem:[%s0 + $0x34] sm:$0xf]
    %v33 = vld [vmem:[%s0 + $0x38] sm:$0xf]
    %v34 = vld [vmem:[%s0 + $0x3c] sm:$0xf]
    %v35 = vld [vmem:[%s0 + $0x40] sm:$0xf]
    %v36 = vld [vmem:[%s0 + $0x44] sm:$0xf]
    %v37 = vld [vmem:[%s0 + $0x48] sm:$0xf]
    %v38 = vld [vmem:[%s0 + $0x4c] sm:$0xf]
    %v39 = vld [vmem:[%s0 + $0x50] sm:$0xf]
    %v40 = vld [vmem:[%s0 + $0x54] sm:$0xf]
    %v41 = vld [vmem:[%s0 + $0x58] sm:$0xf]
    %v42 = vld [vmem:[%s0 + $0x5c] sm:$0xf]
    %v43 = vld [vmem:[%s0 + $0x60] sm:$0xf]
    %v44 = vld [vmem:[%s0 + $0x64] sm:$0xf]
    %v45 = vld [vmem:[%s0 + $0x68] sm:$0xf]
    %v46 = vld [vmem:[%s0 + $0x6c] sm:$0xf]
    %v47 = vld [vmem:[%s0 + $0x70] sm:$0xf]
    %v48 = vld [vmem:[%s0 + $0x74] sm:$0xf]
    %v49 = vld [vmem:[%s0 + $0x78] sm:$0xf]
    %v50 = vld [vmem:[%s0 + $0x7c] sm:$0xf]
    %v51 = vld [vmem:[%s3] sm:$0xf]
    %v52 = vld [vmem:[%s3 + $0x4] sm:$0xf]
    %v53 = vld [vmem:[%s3 + $0x8] sm:$0xf]
    %v54 = vld [vmem:[%s3 + $0xc] sm:$0xf]
    %v87 = vunpack.c.l.b16 %v19
    %v88 = vunpack.c.l.b16 %v20
    %v89 = vunpack.c.l.b16 %v21
    %v90 = vunpack.c.l.b16 %v22
    %v91 = vunpack.c.l.b16 %v23
    %v92 = vunpack.c.l.b16 %v24
    %v93 = vunpack.c.l.b16 %v25
    %v94 = vunpack.c.l.b16 %v26
    %v95 = vunpack.c.l.b16 %v27
    %v96 = vunpack.c.l.b16 %v28
    %v97 = vunpack.c.l.b16 %v29
    %v98 = vunpack.c.l.b16 %v30
    %v99 = vunpack.c.l.b16 %v31
    %v100 = vunpack.c.l.b16 %v32
    %v101 = vunpack.c.l.b16 %v33
    %v102 = vunpack.c.l.b16 %v34
    %v103 = vunpack.c.l.b16 %v35
    %v104 = vunpack.c.l.b16 %v36
    %v105 = vunpack.c.l.b16 %v37
    %v106 = vunpack.c.l.b16 %v38
    %v107 = vunpack.c.l.b16 %v39
    %v108 = vunpack.c.l.b16 %v40
    %v109 = vunpack.c.l.b16 %v41
    %v110 = vunpack.c.l.b16 %v42
    %v111 = vunpack.c.l.b16 %v43
    %v112 = vunpack.c.l.b16 %v44
    %v113 = vunpack.c.l.b16 %v45
    %v114 = vunpack.c.l.b16 %v46
    %v115 = vunpack.c.l.b16 %v47
    %v116 = vunpack.c.l.b16 %v48
    %v117 = vunpack.c.l.b16 %v49
    %v118 = vunpack.c.l.b16 %v50
    %v119 = vpack.c.b16 %v88, %v87
    %v120 = vpack.c.b16 %v90, %v89
    %v121 = vpack.c.b16 %v92, %v91
    %v122 = vpack.c.b16 %v94, %v93
    %v123 = vpack.c.b16 %v96, %v95
    %v124 = vpack.c.b16 %v98, %v97
    %v125 = vpack.c.b16 %v100, %v99
    %v126 = vpack.c.b16 %v102, %v101
    %v127 = vpack.c.b16 %v104, %v103
    %v128 = vpack.c.b16 %v106, %v105
    %v129 = vpack.c.b16 %v108, %v107
    %v130 = vpack.c.b16 %v110, %v109
    %v131 = vpack.c.b16 %v112, %v111
    %v132 = vpack.c.b16 %v114, %v113
    %v133 = vpack.c.b16 %v116, %v115
    %v134 = vpack.c.b16 %v118, %v117
    %v139 = vunpack.c.l.b16 %v51
    %v140 = vunpack.c.l.b16 %v52
    %v141 = vunpack.c.l.b16 %v53
    %v142 = vunpack.c.l.b16 %v54
    %v143 = vpack.c.b16 %v140, %v139
    %v144 = vpack.c.b16 %v142, %v141
    %vm147 = vcmask 261120
    %v149 = vsel %vm147, %v119, 0
    %v152 = vsel %vm147, %v120, 0
    %v155 = vsel %vm147, %v121, 0
    %v158 = vsel %vm147, %v122, 0
    %v161 = vsel %vm147, %v123, 0
    %v164 = vsel %vm147, %v124, 0
    %v167 = vsel %vm147, %v125, 0
    %v170 = vsel %vm147, %v126, 0
    %v173 = vsel %vm147, %v127, 0
    %v176 = vsel %vm147, %v128, 0
    %v179 = vsel %vm147, %v129, 0
    %v182 = vsel %vm147, %v130, 0
    %v185 = vsel %vm147, %v131, 0
    %v188 = vsel %vm147, %v132, 0
    %v191 = vsel %vm147, %v133, 0
    %v194 = vsel %vm147, %v134, 0
    %196 = vmatprep.subr.bf16.mxu0 0
    %197 = vmatpush1.bf16.msra.mxu0 0
    %198 = vmatprep.subr.bf16.mxu0 0
    %199 = vmatpush1.bf16.msra.mxu0 0
    %200 = vmatprep.subr.bf16.mxu0 0
    %201 = vmatpush1.bf16.msra.mxu0 0
    %202 = vmatprep.subr.bf16.mxu0 0
    %203 = vmatpush1.bf16.msra.mxu0 0
    %204 = vmatprep.subr.bf16.mxu0 0
    %205 = vmatpush1.bf16.msra.mxu0 0
    %206 = vmatprep.subr.bf16.mxu0 0
    %207 = vmatpush1.bf16.msra.mxu0 0
    %208 = vmatprep.subr.bf16.mxu0 0
    %209 = vmatpush1.bf16.msra.mxu0 %v144
    %210 = vmatprep.subr.bf16.mxu0 0
    %211 = vmatpush1.bf16.msra.mxu0 %v143
    %212 = vmatprep.subr.bf16.mxu0 0
    %213 = vmatpush2.bf16.msra.mxu0 0
    %214 = vmatprep.subr.bf16.mxu0 0
    %215 = vmatpush2.bf16.msra.mxu0 0
    %216 = vmatprep.subr.bf16.mxu0 0
    %217 = vmatpush2.bf16.msra.mxu0 0
    %218 = vmatprep.subr.bf16.mxu0 0
    %219 = vmatpush2.bf16.msra.mxu0 0
    %220 = vmatprep.subr.bf16.mxu0 0
    %221 = vmatpush2.bf16.msra.mxu0 0
    %222 = vmatprep.subr.bf16.mxu0 0
    %223 = vmatpush2.bf16.msra.mxu0 0
    %224 = vmatprep.subr.bf16.mxu0 0
    %225 = vmatpush2.bf16.msra.mxu0 0
    %226 = vmatprep.subr.bf16.mxu0 0
    %227 = vmatpush2.bf16.msra.mxu0 0
    %228 = vmatprep.mubr.bf16.mxu0 0
    %229 = vmatmul.mubr.bf16.gmra.mxu0 %v149
    %v230 = vpop.f32.mrf.mxu0
    %v231 = vadd.f32 0.0, %v230
    %v232 = vpop.f32.mrf.mxu0
    %v233 = vpop.f32.mrf.mxu0
    %v234 = vadd.f32 0.0, %v233
    %v235 = vpop.f32.mrf.mxu0
    %236 = vmatprep.mubr.bf16.mxu0 0
    %237 = vmatmul.mubr.bf16.gmra.mxu0 %v152
    %v238 = vpop.f32.mrf.mxu0
    %v239 = vadd.f32 0.0, %v238
    %v240 = vpop.f32.mrf.mxu0
    %v241 = vpop.f32.mrf.mxu0
    %v242 = vadd.f32 0.0, %v241
    %v243 = vpop.f32.mrf.mxu0
    %244 = vmatprep.mubr.bf16.mxu0 0
    %245 = vmatmul.mubr.bf16.gmra.mxu0 %v155
    %v246 = vpop.f32.mrf.mxu0
    %v247 = vadd.f32 0.0, %v246
    %v248 = vpop.f32.mrf.mxu0
    %v249 = vpop.f32.mrf.mxu0
    %v250 = vadd.f32 0.0, %v249
    %v251 = vpop.f32.mrf.mxu0
    %252 = vmatprep.mubr.bf16.mxu0 0
    %253 = vmatmul.mubr.bf16.gmra.mxu0 %v158
    %v254 = vpop.f32.mrf.mxu0
    %v255 = vadd.f32 0.0, %v254
    %v256 = vpop.f32.mrf.mxu0
    %v257 = vpop.f32.mrf.mxu0
    %v258 = vadd.f32 0.0, %v257
    %v259 = vpop.f32.mrf.mxu0
    %260 = vmatprep.mubr.bf16.mxu0 0
    %261 = vmatmul.mubr.bf16.gmra.mxu0 %v161
    %v262 = vpop.f32.mrf.mxu0
    %v263 = vadd.f32 0.0, %v262
    %v264 = vpop.f32.mrf.mxu0
    %v265 = vpop.f32.mrf.mxu0
    %v266 = vadd.f32 0.0, %v265
    %v267 = vpop.f32.mrf.mxu0
    %268 = vmatprep.mubr.bf16.mxu0 0
    %269 = vmatmul.mubr.bf16.gmra.mxu0 %v164
    %v270 = vpop.f32.mrf.mxu0
    %v271 = vadd.f32 0.0, %v270
    %v272 = vpop.f32.mrf.mxu0
    %v273 = vpop.f32.mrf.mxu0
    %v274 = vadd.f32 0.0, %v273
    %v275 = vpop.f32.mrf.mxu0
    %276 = vmatprep.mubr.bf16.mxu0 0
    %277 = vmatmul.mubr.bf16.gmra.mxu0 %v167
    %v278 = vpop.f32.mrf.mxu0
    %v279 = vadd.f32 0.0, %v278
    %v280 = vpop.f32.mrf.mxu0
    %v281 = vpop.f32.mrf.mxu0
    %v282 = vadd.f32 0.0, %v281
    %v283 = vpop.f32.mrf.mxu0
    %284 = vmatprep.mubr.bf16.mxu0 0
    %285 = vmatmul.mubr.bf16.gmra.mxu0 %v170
    %v286 = vpop.f32.mrf.mxu0
    %v287 = vadd.f32 0.0, %v286
    %v288 = vpop.f32.mrf.mxu0
    %v289 = vpop.f32.mrf.mxu0
    %v290 = vadd.f32 0.0, %v289
    %v291 = vpop.f32.mrf.mxu0
    %292 = vmatprep.mubr.bf16.mxu0 0
    %293 = vmatmul.mubr.bf16.gmra.mxu0 %v173
    %v294 = vpop.f32.mrf.mxu0
    %v295 = vadd.f32 0.0, %v294
    %v296 = vpop.f32.mrf.mxu0
    %v297 = vpop.f32.mrf.mxu0
    %v298 = vadd.f32 0.0, %v297
    %v299 = vpop.f32.mrf.mxu0
    %300 = vmatprep.mubr.bf16.mxu0 0
    %301 = vmatmul.mubr.bf16.gmra.mxu0 %v176
    %v302 = vpop.f32.mrf.mxu0
    %v303 = vadd.f32 0.0, %v302
    %v304 = vpop.f32.mrf.mxu0
    %v305 = vpop.f32.mrf.mxu0
    %v306 = vadd.f32 0.0, %v305
    %v307 = vpop.f32.mrf.mxu0
    %308 = vmatprep.mubr.bf16.mxu0 0
    %309 = vmatmul.mubr.bf16.gmra.mxu0 %v179
    %v310 = vpop.f32.mrf.mxu0
    %v311 = vadd.f32 0.0, %v310
    %v312 = vpop.f32.mrf.mxu0
    %v313 = vpop.f32.mrf.mxu0
    %v314 = vadd.f32 0.0, %v313
    %v315 = vpop.f32.mrf.mxu0
    %316 = vmatprep.mubr.bf16.mxu0 0
    %317 = vmatmul.mubr.bf16.gmra.mxu0 %v182
    %v318 = vpop.f32.mrf.mxu0
    %v319 = vadd.f32 0.0, %v318
    %v320 = vpop.f32.mrf.mxu0
    %v321 = vpop.f32.mrf.mxu0
    %v322 = vadd.f32 0.0, %v321
    %v323 = vpop.f32.mrf.mxu0
    %324 = vmatprep.mubr.bf16.mxu0 0
    %325 = vmatmul.mubr.bf16.gmra.mxu0 %v185
    %v326 = vpop.f32.mrf.mxu0
    %v327 = vadd.f32 0.0, %v326
    %v328 = vpop.f32.mrf.mxu0
    %v329 = vpop.f32.mrf.mxu0
    %v330 = vadd.f32 0.0, %v329
    %v331 = vpop.f32.mrf.mxu0
    %332 = vmatprep.mubr.bf16.mxu0 0
    %333 = vmatmul.mubr.bf16.gmra.mxu0 %v188
    %v334 = vpop.f32.mrf.mxu0
    %v335 = vadd.f32 0.0, %v334
    %v336 = vpop.f32.mrf.mxu0
    %v337 = vpop.f32.mrf.mxu0
    %v338 = vadd.f32 0.0, %v337
    %v339 = vpop.f32.mrf.mxu0
    %340 = vmatprep.mubr.bf16.mxu0 0
    %341 = vmatmul.mubr.bf16.gmra.mxu0 %v191
    %v342 = vpop.f32.mrf.mxu0
    %v343 = vadd.f32 0.0, %v342
    %v344 = vpop.f32.mrf.mxu0
    %v345 = vpop.f32.mrf.mxu0
    %v346 = vadd.f32 0.0, %v345
    %v347 = vpop.f32.mrf.mxu0
    %348 = vmatprep.mubr.bf16.mxu0 0
    %349 = vmatmul.mubr.bf16.gmra.mxu0 %v194
    %v350 = vpop.f32.mrf.mxu0
    %v351 = vadd.f32 0.0, %v350
    %v352 = vpop.f32.mrf.mxu0
    %v353 = vpop.f32.mrf.mxu0
    %v354 = vadd.f32 0.0, %v353
    %v355 = vpop.f32.mrf.mxu0
    %356 = vdwg.mxu0
    %v357 = vmax.f32 %v231, 0.0
    %v358 = vmax.f32 %v234, 0.0
    %v359 = vmax.f32 %v239, 0.0
    %v360 = vmax.f32 %v242, 0.0
    %v361 = vmax.f32 %v247, 0.0
    %v362 = vmax.f32 %v250, 0.0
    %v363 = vmax.f32 %v255, 0.0
    %v364 = vmax.f32 %v258, 0.0
    %v365 = vmax.f32 %v263, 0.0
    %v366 = vmax.f32 %v266, 0.0
    %v367 = vmax.f32 %v271, 0.0
    %v368 = vmax.f32 %v274, 0.0
    %v369 = vmax.f32 %v279, 0.0
    %v370 = vmax.f32 %v282, 0.0
    %v371 = vmax.f32 %v287, 0.0
    %v372 = vmax.f32 %v290, 0.0
    %v373 = vmax.f32 %v295, 0.0
    %v374 = vmax.f32 %v298, 0.0
    %v375 = vmax.f32 %v303, 0.0
    %v376 = vmax.f32 %v306, 0.0
    %v377 = vmax.f32 %v311, 0.0
    %v378 = vmax.f32 %v314, 0.0
    %v379 = vmax.f32 %v319, 0.0
    %v380 = vmax.f32 %v322, 0.0
    %v381 = vmax.f32 %v327, 0.0
    %v382 = vmax.f32 %v330, 0.0
    %v383 = vmax.f32 %v335, 0.0
    %v384 = vmax.f32 %v338, 0.0
    %v385 = vmax.f32 %v343, 0.0
    %v386 = vmax.f32 %v346, 0.0
    %v387 = vmax.f32 %v351, 0.0
    %v388 = vmax.f32 %v354, 0.0
    %v389 = vpack.c.bf16 %v358, %v357
    %v390 = vpack.c.bf16 %v360, %v359
    %v391 = vpack.c.bf16 %v362, %v361
    %v392 = vpack.c.bf16 %v364, %v363
    %v393 = vpack.c.bf16 %v366, %v365
    %v394 = vpack.c.bf16 %v368, %v367
    %v395 = vpack.c.bf16 %v370, %v369
    %v396 = vpack.c.bf16 %v372, %v371
    %v397 = vpack.c.bf16 %v374, %v373
    %v398 = vpack.c.bf16 %v376, %v375
    %v399 = vpack.c.bf16 %v378, %v377
    %v400 = vpack.c.bf16 %v380, %v379
    %v401 = vpack.c.bf16 %v382, %v381
    %v402 = vpack.c.bf16 %v384, %v383
    %v403 = vpack.c.bf16 %v386, %v385
    %v404 = vpack.c.bf16 %v388, %v387
    %v406 = vsel %vm147, %v389, 0
    %v409 = vsel %vm147, %v390, 0
    %v412 = vsel %vm147, %v391, 0
    %v415 = vsel %vm147, %v392, 0
    %v418 = vsel %vm147, %v393, 0
    %v421 = vsel %vm147, %v394, 0
    %v424 = vsel %vm147, %v395, 0
    %v427 = vsel %vm147, %v396, 0
    %429 = vmatprep.subr.bf16.mxu0 0
    %430 = vmatpush1.bf16.xpose.msra.mxu0 %v427
    %431 = vmatprep.subr.bf16.mxu0 0
    %432 = vmatpush1.bf16.xpose.msra.mxu0 %v424
    %433 = vmatprep.subr.bf16.mxu0 0
    %434 = vmatpush1.bf16.xpose.msra.mxu0 %v421
    %435 = vmatprep.subr.bf16.mxu0 0
    %436 = vmatpush1.bf16.xpose.msra.mxu0 %v418
    %437 = vmatprep.subr.bf16.mxu0 0
    %438 = vmatpush1.bf16.xpose.msra.mxu0 %v415
    %439 = vmatprep.subr.bf16.mxu0 0
    %440 = vmatpush1.bf16.xpose.msra.mxu0 %v412
    %441 = vmatprep.subr.bf16.mxu0 0
    %442 = vmatpush1.bf16.xpose.msra.mxu0 %v409
    %443 = vmatprep.subr.bf16.mxu0 0
    %444 = vmatpush1.bf16.xpose.msra.mxu0 %v406
    %445 = vmatprep.subr.bf16.mxu0 0
    %446 = vmatpush2.bf16.xpose.msra.mxu0 0
    %447 = vmatprep.subr.bf16.mxu0 0
    %448 = vmatpush2.bf16.xpose.msra.mxu0 0
    %449 = vmatprep.subr.bf16.mxu0 0
    %450 = vmatpush2.bf16.xpose.msra.mxu0 0
    %451 = vmatprep.subr.bf16.mxu0 0
    %452 = vmatpush2.bf16.xpose.msra.mxu0 0
    %453 = vmatprep.subr.bf16.mxu0 0
    %454 = vmatpush2.bf16.xpose.msra.mxu0 0
    %455 = vmatprep.subr.bf16.mxu0 0
    %456 = vmatpush2.bf16.xpose.msra.mxu0 0
    %457 = vmatprep.subr.bf16.mxu0 0
    %458 = vmatpush2.bf16.xpose.msra.mxu0 0
    %459 = vmatprep.subr.bf16.mxu0 0
    %460 = vmatpush2.bf16.xpose.msra.mxu0 0
    %461 = vmatprep.mubr.bf16.mxu0 0
    %462 = vmatmul.mubr.bf16.gmra.mxu0 %v406
    %v463 = vpop.f32.mrf.mxu0
    %v464 = vadd.f32 0.0, %v463
    %v465 = vpop.f32.mrf.mxu0
    %v466 = vpop.f32.mrf.mxu0
    %v467 = vadd.f32 0.0, %v466
    %v468 = vpop.f32.mrf.mxu0
    %469 = vmatprep.mubr.bf16.mxu0 0
    %470 = vmatmul.mubr.bf16.gmra.mxu0 %v409
    %v471 = vpop.f32.mrf.mxu0
    %v472 = vadd.f32 0.0, %v471
    %v473 = vpop.f32.mrf.mxu0
    %v474 = vpop.f32.mrf.mxu0
    %v475 = vadd.f32 0.0, %v474
    %v476 = vpop.f32.mrf.mxu0
    %477 = vmatprep.mubr.bf16.mxu0 0
    %478 = vmatmul.mubr.bf16.gmra.mxu0 %v412
    %v479 = vpop.f32.mrf.mxu0
    %v480 = vadd.f32 0.0, %v479
    %v481 = vpop.f32.mrf.mxu0
    %v482 = vpop.f32.mrf.mxu0
    %v483 = vadd.f32 0.0, %v482
    %v484 = vpop.f32.mrf.mxu0
    %485 = vmatprep.mubr.bf16.mxu0 0
    %486 = vmatmul.mubr.bf16.gmra.mxu0 %v415
    %v487 = vpop.f32.mrf.mxu0
    %v488 = vadd.f32 0.0, %v487
    %v489 = vpop.f32.mrf.mxu0
    %v490 = vpop.f32.mrf.mxu0
    %v491 = vadd.f32 0.0, %v490
    %v492 = vpop.f32.mrf.mxu0
    %493 = vmatprep.mubr.bf16.mxu0 0
    %494 = vmatmul.mubr.bf16.gmra.mxu0 %v418
    %v495 = vpop.f32.mrf.mxu0
    %v496 = vadd.f32 0.0, %v495
    %v497 = vpop.f32.mrf.mxu0
    %v498 = vpop.f32.mrf.mxu0
    %v499 = vadd.f32 0.0, %v498
    %v500 = vpop.f32.mrf.mxu0
    %501 = vmatprep.mubr.bf16.mxu0 0
    %502 = vmatmul.mubr.bf16.gmra.mxu0 %v421
    %v503 = vpop.f32.mrf.mxu0
    %v504 = vadd.f32 0.0, %v503
    %v505 = vpop.f32.mrf.mxu0
    %v506 = vpop.f32.mrf.mxu0
    %v507 = vadd.f32 0.0, %v506
    %v508 = vpop.f32.mrf.mxu0
    %509 = vmatprep.mubr.bf16.mxu0 0
    %510 = vmatmul.mubr.bf16.gmra.mxu0 %v424
    %v511 = vpop.f32.mrf.mxu0
    %v512 = vadd.f32 0.0, %v511
    %v513 = vpop.f32.mrf.mxu0
    %v514 = vpop.f32.mrf.mxu0
    %v515 = vadd.f32 0.0, %v514
    %v516 = vpop.f32.mrf.mxu0
    %517 = vmatprep.mubr.bf16.mxu0 0
    %518 = vmatmul.mubr.bf16.gmra.mxu0 %v427
    %v519 = vpop.f32.mrf.mxu0
    %v520 = vadd.f32 0.0, %v519
    %v521 = vpop.f32.mrf.mxu0
    %v522 = vpop.f32.mrf.mxu0
    %v523 = vadd.f32 0.0, %v522
    %v524 = vpop.f32.mrf.mxu0
    %525 = vdwg.mxu0
    %v527 = vsel %vm147, %v397, 0
    %v530 = vsel %vm147, %v398, 0
    %v533 = vsel %vm147, %v399, 0
    %v536 = vsel %vm147, %v400, 0
    %v539 = vsel %vm147, %v401, 0
    %v542 = vsel %vm147, %v402, 0
    %v545 = vsel %vm147, %v403, 0
    %v548 = vsel %vm147, %v404, 0
    %550 = vmatprep.subr.bf16.mxu0 0
    %551 = vmatpush1.bf16.xpose.msra.mxu0 %v548
    %552 = vmatprep.subr.bf16.mxu0 0
    %553 = vmatpush1.bf16.xpose.msra.mxu0 %v545
    %554 = vmatprep.subr.bf16.mxu0 0
    %555 = vmatpush1.bf16.xpose.msra.mxu0 %v542
    %556 = vmatprep.subr.bf16.mxu0 0
    %557 = vmatpush1.bf16.xpose.msra.mxu0 %v539
    %558 = vmatprep.subr.bf16.mxu0 0
    %559 = vmatpush1.bf16.xpose.msra.mxu0 %v536
    %560 = vmatprep.subr.bf16.mxu0 0
    %561 = vmatpush1.bf16.xpose.msra.mxu0 %v533
    %562 = vmatprep.subr.bf16.mxu0 0
    %563 = vmatpush1.bf16.xpose.msra.mxu0 %v530
    %564 = vmatprep.subr.bf16.mxu0 0
    %565 = vmatpush1.bf16.xpose.msra.mxu0 %v527
    %566 = vmatprep.subr.bf16.mxu0 0
    %567 = vmatpush2.bf16.xpose.msra.mxu0 0
    %568 = vmatprep.subr.bf16.mxu0 0
    %569 = vmatpush2.bf16.xpose.msra.mxu0 0
    %570 = vmatprep.subr.bf16.mxu0 0
    %571 = vmatpush2.bf16.xpose.msra.mxu0 0
    %572 = vmatprep.subr.bf16.mxu0 0
    %573 = vmatpush2.bf16.xpose.msra.mxu0 0
    %574 = vmatprep.subr.bf16.mxu0 0
    %575 = vmatpush2.bf16.xpose.msra.mxu0 0
    %576 = vmatprep.subr.bf16.mxu0 0
    %577 = vmatpush2.bf16.xpose.msra.mxu0 0
    %578 = vmatprep.subr.bf16.mxu0 0
    %579 = vmatpush2.bf16.xpose.msra.mxu0 0
    %580 = vmatprep.subr.bf16.mxu0 0
    %581 = vmatpush2.bf16.xpose.msra.mxu0 0
    %582 = vmatprep.mubr.bf16.mxu0 0
    %583 = vmatmul.mubr.bf16.gmra.mxu0 %v527
    %v584 = vpop.f32.mrf.mxu0
    %v585 = vadd.f32 0.0, %v584
    %v586 = vpop.f32.mrf.mxu0
    %v587 = vpop.f32.mrf.mxu0
    %v588 = vadd.f32 0.0, %v587
    %v589 = vpop.f32.mrf.mxu0
    %590 = vmatprep.mubr.bf16.mxu0 0
    %591 = vmatmul.mubr.bf16.gmra.mxu0 %v530
    %v592 = vpop.f32.mrf.mxu0
    %v593 = vadd.f32 0.0, %v592
    %v594 = vpop.f32.mrf.mxu0
    %v595 = vpop.f32.mrf.mxu0
    %v596 = vadd.f32 0.0, %v595
    %v597 = vpop.f32.mrf.mxu0
    %598 = vmatprep.mubr.bf16.mxu0 0
    %599 = vmatmul.mubr.bf16.gmra.mxu0 %v533
    %v600 = vpop.f32.mrf.mxu0
    %v601 = vadd.f32 0.0, %v600
    %v602 = vpop.f32.mrf.mxu0
    %v603 = vpop.f32.mrf.mxu0
    %v604 = vadd.f32 0.0, %v603
    %v605 = vpop.f32.mrf.mxu0
    %606 = vmatprep.mubr.bf16.mxu0 0
    %607 = vmatmul.mubr.bf16.gmra.mxu0 %v536
    %v608 = vpop.f32.mrf.mxu0
    %v609 = vadd.f32 0.0, %v608
    %v610 = vpop.f32.mrf.mxu0
    %v611 = vpop.f32.mrf.mxu0
    %v612 = vadd.f32 0.0, %v611
    %v613 = vpop.f32.mrf.mxu0
    %614 = vmatprep.mubr.bf16.mxu0 0
    %615 = vmatmul.mubr.bf16.gmra.mxu0 %v539
    %v616 = vpop.f32.mrf.mxu0
    %v617 = vadd.f32 0.0, %v616
    %v618 = vpop.f32.mrf.mxu0
    %v619 = vpop.f32.mrf.mxu0
    %v620 = vadd.f32 0.0, %v619
    %v621 = vpop.f32.mrf.mxu0
    %622 = vmatprep.mubr.bf16.mxu0 0
    %623 = vmatmul.mubr.bf16.gmra.mxu0 %v542
    %v624 = vpop.f32.mrf.mxu0
    %v625 = vadd.f32 0.0, %v624
    %v626 = vpop.f32.mrf.mxu0
    %v627 = vpop.f32.mrf.mxu0
    %v628 = vadd.f32 0.0, %v627
    %v629 = vpop.f32.mrf.mxu0
    %630 = vmatprep.mubr.bf16.mxu0 0
    %631 = vmatmul.mubr.bf16.gmra.mxu0 %v545
    %v632 = vpop.f32.mrf.mxu0
    %v633 = vadd.f32 0.0, %v632
    %v634 = vpop.f32.mrf.mxu0
    %v635 = vpop.f32.mrf.mxu0
    %v636 = vadd.f32 0.0, %v635
    %v637 = vpop.f32.mrf.mxu0
    %638 = vmatprep.mubr.bf16.mxu0 0
    %639 = vmatmul.mubr.bf16.gmra.mxu0 %v548
    %v640 = vpop.f32.mrf.mxu0
    %v641 = vadd.f32 0.0, %v640
    %v642 = vpop.f32.mrf.mxu0
    %v643 = vpop.f32.mrf.mxu0
    %v644 = vadd.f32 0.0, %v643
    %v645 = vpop.f32.mrf.mxu0
    %646 = vdwg.mxu0
    %v647 = vld [vmem:[%s1] sm:$0x1]
    %v648 = vld [vmem:[%s1 + $0x1] sm:$0x1]
    %vm649 = vcmp.gt.f32.partialorder %v647, 0.5
    %vm650 = vcmp.gt.f32.partialorder %v648, 0.5
    %v651 = vsel %vm649, 1, 0
    %v652 = vsel %vm650, 1, 0
    %v653 = vlaneseq
    %v654 = vshrl.u32 %v653, 7
    %v655 = vsub.s32 0, %v654
    %v656 = vrot.slane %v651, %v655
    %v657 = vlaneseq
    %v658 = vshrl.u32 %v657, 7
    %v659 = vsub.s32 0, %v658
    %v660 = vrot.slane %v652, %v659
    %vm661 = vcmp.eq.s32.totalorder %v656, 1
    %vm662 = vcmp.eq.s32.totalorder %v660, 1
    %v663 = vsel %vm661, %v464, -1e+20
    %v664 = vsel %vm661, %v467, -1e+20
    %v665 = vsel %vm661, %v472, -1e+20
    %v666 = vsel %vm661, %v475, -1e+20
    %v667 = vsel %vm661, %v480, -1e+20
    %v668 = vsel %vm661, %v483, -1e+20
    %v669 = vsel %vm661, %v488, -1e+20
    %v670 = vsel %vm661, %v491, -1e+20
    %v671 = vsel %vm661, %v496, -1e+20
    %v672 = vsel %vm661, %v499, -1e+20
    %v673 = vsel %vm661, %v504, -1e+20
    %v674 = vsel %vm661, %v507, -1e+20
    %v675 = vsel %vm661, %v512, -1e+20
    %v676 = vsel %vm661, %v515, -1e+20
    %v677 = vsel %vm661, %v520, -1e+20
    %v678 = vsel %vm661, %v523, -1e+20
    %v679 = vsel %vm662, %v585, -1e+20
    %v680 = vsel %vm662, %v588, -1e+20
    %v681 = vsel %vm662, %v593, -1e+20
    %v682 = vsel %vm662, %v596, -1e+20
    %v683 = vsel %vm662, %v601, -1e+20
    %v684 = vsel %vm662, %v604, -1e+20
    %v685 = vsel %vm662, %v609, -1e+20
    %v686 = vsel %vm662, %v612, -1e+20
    %v687 = vsel %vm662, %v617, -1e+20
    %v688 = vsel %vm662, %v620, -1e+20
    %v689 = vsel %vm662, %v625, -1e+20
    %v690 = vsel %vm662, %v628, -1e+20
    %v691 = vsel %vm662, %v633, -1e+20
    %v692 = vsel %vm662, %v636, -1e+20
    %v693 = vsel %vm662, %v641, -1e+20
    %v694 = vsel %vm662, %v644, -1e+20
    %v695 = vld [vmem:[%s2] sm:$0xff]
    %v696 = vld [vmem:[%s2 + $0x8] sm:$0xff]
    %v697 = vld [vmem:[%s2 + $0x10] sm:$0xff]
    %v698 = vld [vmem:[%s2 + $0x18] sm:$0xff]
    %v699 = vld [vmem:[%s2 + $0x20] sm:$0xff]
    %v700 = vld [vmem:[%s2 + $0x28] sm:$0xff]
    %v701 = vld [vmem:[%s2 + $0x30] sm:$0xff]
    %v702 = vld [vmem:[%s2 + $0x38] sm:$0xff]
    %v703 = vld [vmem:[%s2 + $0x40] sm:$0xff]
    %v704 = vld [vmem:[%s2 + $0x48] sm:$0xff]
    %v705 = vld [vmem:[%s2 + $0x50] sm:$0xff]
    %v706 = vld [vmem:[%s2 + $0x58] sm:$0xff]
    %v707 = vld [vmem:[%s2 + $0x60] sm:$0xff]
    %v708 = vld [vmem:[%s2 + $0x68] sm:$0xff]
    %v709 = vld [vmem:[%s2 + $0x70] sm:$0xff]
    %v710 = vld [vmem:[%s2 + $0x78] sm:$0xff]
    %v711 = vld [vmem:[%s2 + $0x80] sm:$0xff]
    %v712 = vld [vmem:[%s2 + $0x88] sm:$0xff]
    %v713 = vld [vmem:[%s2 + $0x90] sm:$0xff]
    %v714 = vld [vmem:[%s2 + $0x98] sm:$0xff]
    %v715 = vld [vmem:[%s2 + $0xa0] sm:$0xff]
    %v716 = vld [vmem:[%s2 + $0xa8] sm:$0xff]
    %v717 = vld [vmem:[%s2 + $0xb0] sm:$0xff]
    %v718 = vld [vmem:[%s2 + $0xb8] sm:$0xff]
    %v719 = vld [vmem:[%s2 + $0xc0] sm:$0xff]
    %v720 = vld [vmem:[%s2 + $0xc8] sm:$0xff]
    %v721 = vld [vmem:[%s2 + $0xd0] sm:$0xff]
    %v722 = vld [vmem:[%s2 + $0xd8] sm:$0xff]
    %v723 = vld [vmem:[%s2 + $0xe0] sm:$0xff]
    %v724 = vld [vmem:[%s2 + $0xe8] sm:$0xff]
    %v725 = vld [vmem:[%s2 + $0xf0] sm:$0xff]
    %v726 = vld [vmem:[%s2 + $0xf8] sm:$0xff]
    %vm727 = vcmp.gt.f32.partialorder %v695, 0.5
    %vm728 = vcmp.gt.f32.partialorder %v696, 0.5
    %vm729 = vcmp.gt.f32.partialorder %v697, 0.5
    %vm730 = vcmp.gt.f32.partialorder %v698, 0.5
    %vm731 = vcmp.gt.f32.partialorder %v699, 0.5
    %vm732 = vcmp.gt.f32.partialorder %v700, 0.5
    %vm733 = vcmp.gt.f32.partialorder %v701, 0.5
    %vm734 = vcmp.gt.f32.partialorder %v702, 0.5
    %vm735 = vcmp.gt.f32.partialorder %v703, 0.5
    %vm736 = vcmp.gt.f32.partialorder %v704, 0.5
    %vm737 = vcmp.gt.f32.partialorder %v705, 0.5
    %vm738 = vcmp.gt.f32.partialorder %v706, 0.5
    %vm739 = vcmp.gt.f32.partialorder %v707, 0.5
    %vm740 = vcmp.gt.f32.partialorder %v708, 0.5
    %vm741 = vcmp.gt.f32.partialorder %v709, 0.5
    %vm742 = vcmp.gt.f32.partialorder %v710, 0.5
    %vm743 = vcmp.gt.f32.partialorder %v711, 0.5
    %vm744 = vcmp.gt.f32.partialorder %v712, 0.5
    %vm745 = vcmp.gt.f32.partialorder %v713, 0.5
    %vm746 = vcmp.gt.f32.partialorder %v714, 0.5
    %vm747 = vcmp.gt.f32.partialorder %v715, 0.5
    %vm748 = vcmp.gt.f32.partialorder %v716, 0.5
    %vm749 = vcmp.gt.f32.partialorder %v717, 0.5
    %vm750 = vcmp.gt.f32.partialorder %v718, 0.5
    %vm751 = vcmp.gt.f32.partialorder %v719, 0.5
    %vm752 = vcmp.gt.f32.partialorder %v720, 0.5
    %vm753 = vcmp.gt.f32.partialorder %v721, 0.5
    %vm754 = vcmp.gt.f32.partialorder %v722, 0.5
    %vm755 = vcmp.gt.f32.partialorder %v723, 0.5
    %vm756 = vcmp.gt.f32.partialorder %v724, 0.5
    %vm757 = vcmp.gt.f32.partialorder %v725, 0.5
    %vm758 = vcmp.gt.f32.partialorder %v726, 0.5
    %v759 = vsel %vm727, 1, 0
    %v760 = vsel %vm728, 1, 0
    %v761 = vsel %vm729, 1, 0
    %v762 = vsel %vm730, 1, 0
    %v763 = vsel %vm731, 1, 0
    %v764 = vsel %vm732, 1, 0
    %v765 = vsel %vm733, 1, 0
    %v766 = vsel %vm734, 1, 0
    %v767 = vsel %vm735, 1, 0
    %v768 = vsel %vm736, 1, 0
    %v769 = vsel %vm737, 1, 0
    %v770 = vsel %vm738, 1, 0
    %v771 = vsel %vm739, 1, 0
    %v772 = vsel %vm740, 1, 0
    %v773 = vsel %vm741, 1, 0
    %v774 = vsel %vm742, 1, 0
    %v775 = vsel %vm743, 1, 0
    %v776 = vsel %vm744, 1, 0
    %v777 = vsel %vm745, 1, 0
    %v778 = vsel %vm746, 1, 0
    %v779 = vsel %vm747, 1, 0
    %v780 = vsel %vm748, 1, 0
    %v781 = vsel %vm749, 1, 0
    %v782 = vsel %vm750, 1, 0
    %v783 = vsel %vm751, 1, 0
    %v784 = vsel %vm752, 1, 0
    %v785 = vsel %vm753, 1, 0
    %v786 = vsel %vm754, 1, 0
    %v787 = vsel %vm755, 1, 0
    %v788 = vsel %vm756, 1, 0
    %v789 = vsel %vm757, 1, 0
    %v790 = vsel %vm758, 1, 0
    %791 = vset.pattern.permute.xlu0 0
    %792 = vperm.xlu0 %791, %v759
    %v793 = vpop.permute.xlu0 %792
    %794 = vset.pattern.permute.xlu0 0
    %795 = vperm.xlu0 %794, %v760
    %v796 = vpop.permute.xlu0 %795
    %797 = vset.pattern.permute.xlu0 0
    %798 = vperm.xlu0 %797, %v761
    %v799 = vpop.permute.xlu0 %798
    %800 = vset.pattern.permute.xlu0 0
    %801 = vperm.xlu0 %800, %v762
    %v802 = vpop.permute.xlu0 %801
    %803 = vset.pattern.permute.xlu0 0
    %804 = vperm.xlu0 %803, %v763
    %v805 = vpop.permute.xlu0 %804
    %806 = vset.pattern.permute.xlu0 0
    %807 = vperm.xlu0 %806, %v764
    %v808 = vpop.permute.xlu0 %807
    %809 = vset.pattern.permute.xlu0 0
    %810 = vperm.xlu0 %809, %v765
    %v811 = vpop.permute.xlu0 %810
    %812 = vset.pattern.permute.xlu0 0
    %813 = vperm.xlu0 %812, %v766
    %v814 = vpop.permute.xlu0 %813
    %815 = vset.pattern.permute.xlu0 0
    %816 = vperm.xlu0 %815, %v767
    %v817 = vpop.permute.xlu0 %816
    %818 = vset.pattern.permute.xlu0 0
    %819 = vperm.xlu0 %818, %v768
    %v820 = vpop.permute.xlu0 %819
    %821 = vset.pattern.permute.xlu0 0
    %822 = vperm.xlu0 %821, %v769
    %v823 = vpop.permute.xlu0 %822
    %824 = vset.pattern.permute.xlu0 0
    %825 = vperm.xlu0 %824, %v770
    %v826 = vpop.permute.xlu0 %825
    %827 = vset.pattern.permute.xlu0 0
    %828 = vperm.xlu0 %827, %v771
    %v829 = vpop.permute.xlu0 %828
    %830 = vset.pattern.permute.xlu0 0
    %831 = vperm.xlu0 %830, %v772
    %v832 = vpop.permute.xlu0 %831
    %833 = vset.pattern.permute.xlu0 0
    %834 = vperm.xlu0 %833, %v773
    %v835 = vpop.permute.xlu0 %834
    %836 = vset.pattern.permute.xlu0 0
    %837 = vperm.xlu0 %836, %v774
    %v838 = vpop.permute.xlu0 %837
    %839 = vset.pattern.permute.xlu0 0
    %840 = vperm.xlu0 %839, %v775
    %v841 = vpop.permute.xlu0 %840
    %842 = vset.pattern.permute.xlu0 0
    %843 = vperm.xlu0 %842, %v776
    %v844 = vpop.permute.xlu0 %843
    %845 = vset.pattern.permute.xlu0 0
    %846 = vperm.xlu0 %845, %v777
    %v847 = vpop.permute.xlu0 %846
    %848 = vset.pattern.permute.xlu0 0
    %849 = vperm.xlu0 %848, %v778
    %v850 = vpop.permute.xlu0 %849
    %851 = vset.pattern.permute.xlu0 0
    %852 = vperm.xlu0 %851, %v779
    %v853 = vpop.permute.xlu0 %852
    %854 = vset.pattern.permute.xlu0 0
    %855 = vperm.xlu0 %854, %v780
    %v856 = vpop.permute.xlu0 %855
    %857 = vset.pattern.permute.xlu0 0
    %858 = vperm.xlu0 %857, %v781
    %v859 = vpop.permute.xlu0 %858
    %860 = vset.pattern.permute.xlu0 0
    %861 = vperm.xlu0 %860, %v782
    %v862 = vpop.permute.xlu0 %861
    %863 = vset.pattern.permute.xlu0 0
    %864 = vperm.xlu0 %863, %v783
    %v865 = vpop.permute.xlu0 %864
    %866 = vset.pattern.permute.xlu0 0
    %867 = vperm.xlu0 %866, %v784
    %v868 = vpop.permute.xlu0 %867
    %869 = vset.pattern.permute.xlu0 0
    %870 = vperm.xlu0 %869, %v785
    %v871 = vpop.permute.xlu0 %870
    %872 = vset.pattern.permute.xlu0 0
    %873 = vperm.xlu0 %872, %v786
    %v874 = vpop.permute.xlu0 %873
    %875 = vset.pattern.permute.xlu0 0
    %876 = vperm.xlu0 %875, %v787
    %v877 = vpop.permute.xlu0 %876
    %878 = vset.pattern.permute.xlu0 0
    %879 = vperm.xlu0 %878, %v788
    %v880 = vpop.permute.xlu0 %879
    %881 = vset.pattern.permute.xlu0 0
    %882 = vperm.xlu0 %881, %v789
    %v883 = vpop.permute.xlu0 %882
    %884 = vset.pattern.permute.xlu0 0
    %885 = vperm.xlu0 %884, %v790
    %v886 = vpop.permute.xlu0 %885
    %vm887 = vcmp.eq.s32.totalorder %v793, 1
    %vm888 = vcmp.eq.s32.totalorder %v796, 1
    %vm889 = vcmp.eq.s32.totalorder %v799, 1
    %vm890 = vcmp.eq.s32.totalorder %v802, 1
    %vm891 = vcmp.eq.s32.totalorder %v805, 1
    %vm892 = vcmp.eq.s32.totalorder %v808, 1
    %vm893 = vcmp.eq.s32.totalorder %v811, 1
    %vm894 = vcmp.eq.s32.totalorder %v814, 1
    %vm895 = vcmp.eq.s32.totalorder %v817, 1
    %vm896 = vcmp.eq.s32.totalorder %v820, 1
    %vm897 = vcmp.eq.s32.totalorder %v823, 1
    %vm898 = vcmp.eq.s32.totalorder %v826, 1
    %vm899 = vcmp.eq.s32.totalorder %v829, 1
    %vm900 = vcmp.eq.s32.totalorder %v832, 1
    %vm901 = vcmp.eq.s32.totalorder %v835, 1
    %vm902 = vcmp.eq.s32.totalorder %v838, 1
    %vm903 = vcmp.eq.s32.totalorder %v841, 1
    %vm904 = vcmp.eq.s32.totalorder %v844, 1
    %vm905 = vcmp.eq.s32.totalorder %v847, 1
    %vm906 = vcmp.eq.s32.totalorder %v850, 1
    %vm907 = vcmp.eq.s32.totalorder %v853, 1
    %vm908 = vcmp.eq.s32.totalorder %v856, 1
    %vm909 = vcmp.eq.s32.totalorder %v859, 1
    %vm910 = vcmp.eq.s32.totalorder %v862, 1
    %vm911 = vcmp.eq.s32.totalorder %v865, 1
    %vm912 = vcmp.eq.s32.totalorder %v868, 1
    %vm913 = vcmp.eq.s32.totalorder %v871, 1
    %vm914 = vcmp.eq.s32.totalorder %v874, 1
    %vm915 = vcmp.eq.s32.totalorder %v877, 1
    %vm916 = vcmp.eq.s32.totalorder %v880, 1
    %vm917 = vcmp.eq.s32.totalorder %v883, 1
    %vm918 = vcmp.eq.s32.totalorder %v886, 1
    %v919 = vsel %vm887, %v663, -1e+20
    %v920 = vsel %vm888, %v664, -1e+20
    %v921 = vsel %vm889, %v665, -1e+20
    %v922 = vsel %vm890, %v666, -1e+20
    %v923 = vsel %vm891, %v667, -1e+20
    %v924 = vsel %vm892, %v668, -1e+20
    %v925 = vsel %vm893, %v669, -1e+20
    %v926 = vsel %vm894, %v670, -1e+20
    %v927 = vsel %vm895, %v671, -1e+20
    %v928 = vsel %vm896, %v672, -1e+20
    %v929 = vsel %vm897, %v673, -1e+20
    %v930 = vsel %vm898, %v674, -1e+20
    %v931 = vsel %vm899, %v675, -1e+20
    %v932 = vsel %vm900, %v676, -1e+20
    %v933 = vsel %vm901, %v677, -1e+20
    %v934 = vsel %vm902, %v678, -1e+20
    %v935 = vsel %vm903, %v679, -1e+20
    %v936 = vsel %vm904, %v680, -1e+20
    %v937 = vsel %vm905, %v681, -1e+20
    %v938 = vsel %vm906, %v682, -1e+20
    %v939 = vsel %vm907, %v683, -1e+20
    %v940 = vsel %vm908, %v684, -1e+20
    %v941 = vsel %vm909, %v685, -1e+20
    %v942 = vsel %vm910, %v686, -1e+20
    %v943 = vsel %vm911, %v687, -1e+20
    %v944 = vsel %vm912, %v688, -1e+20
    %v945 = vsel %vm913, %v689, -1e+20
    %v946 = vsel %vm914, %v690, -1e+20
    %v947 = vsel %vm915, %v691, -1e+20
    %v948 = vsel %vm916, %v692, -1e+20
    %v949 = vsel %vm917, %v693, -1e+20
    %v950 = vsel %vm918, %v694, -1e+20
    %951 = vst [vmem:[#allocation2] sm:$0xff] %v919
    %952 = vst [vmem:[#allocation2 + $0x8] sm:$0xff] %v920
    %953 = vst [vmem:[#allocation2 + $0x10] sm:$0xff] %v921
    %954 = vst [vmem:[#allocation2 + $0x18] sm:$0xff] %v922
    %955 = vst [vmem:[#allocation2 + $0x20] sm:$0xff] %v923
    %956 = vst [vmem:[#allocation2 + $0x28] sm:$0xff] %v924
    %957 = vst [vmem:[#allocation2 + $0x30] sm:$0xff] %v925
    %958 = vst [vmem:[#allocation2 + $0x38] sm:$0xff] %v926
    %959 = vst [vmem:[#allocation2 + $0x40] sm:$0xff] %v927
    %960 = vst [vmem:[#allocation2 + $0x48] sm:$0xff] %v928
    %961 = vst [vmem:[#allocation2 + $0x50] sm:$0xff] %v929
    %962 = vst [vmem:[#allocation2 + $0x58] sm:$0xff] %v930
    %963 = vst [vmem:[#allocation2 + $0x60] sm:$0xff] %v931
    %964 = vst [vmem:[#allocation2 + $0x68] sm:$0xff] %v932
    %965 = vst [vmem:[#allocation2 + $0x70] sm:$0xff] %v933
    %966 = vst [vmem:[#allocation2 + $0x78] sm:$0xff] %v934
    %967 = vst [vmem:[#allocation2 + $0x80] sm:$0xff] %v935
    %968 = vst [vmem:[#allocation2 + $0x88] sm:$0xff] %v936
    %969 = vst [vmem:[#allocation2 + $0x90] sm:$0xff] %v937
    %970 = vst [vmem:[#allocation2 + $0x98] sm:$0xff] %v938
    %971 = vst [vmem:[#allocation2 + $0xa0] sm:$0xff] %v939
    %972 = vst [vmem:[#allocation2 + $0xa8] sm:$0xff] %v940
    %973 = vst [vmem:[#allocation2 + $0xb0] sm:$0xff] %v941
    %974 = vst [vmem:[#allocation2 + $0xb8] sm:$0xff] %v942
    %975 = vst [vmem:[#allocation2 + $0xc0] sm:$0xff] %v943
    %976 = vst [vmem:[#allocation2 + $0xc8] sm:$0xff] %v944
    %977 = vst [vmem:[#allocation2 + $0xd0] sm:$0xff] %v945
    %978 = vst [vmem:[#allocation2 + $0xd8] sm:$0xff] %v946
    %979 = vst [vmem:[#allocation2 + $0xe0] sm:$0xff] %v947
    %980 = vst [vmem:[#allocation2 + $0xe8] sm:$0xff] %v948
    %981 = vst [vmem:[#allocation2 + $0xf0] sm:$0xff] %v949
    %982 = vst [vmem:[#allocation2 + $0xf8] sm:$0xff] %v950
    %983 = vmax.xlane.f32.xlu0 %v919
    %v984 = vpop.xlane.xlu0 %983
    %985 = vmax.xlane.f32.xlu0 %v920
    %v986 = vpop.xlane.xlu0 %985
    %987 = vmax.xlane.f32.xlu0 %v921
    %v988 = vpop.xlane.xlu0 %987
    %989 = vmax.xlane.f32.xlu0 %v922
    %v990 = vpop.xlane.xlu0 %989
    %991 = vmax.xlane.f32.xlu0 %v923
    %v992 = vpop.xlane.xlu0 %991
    %993 = vmax.xlane.f32.xlu0 %v924
    %v994 = vpop.xlane.xlu0 %993
    %995 = vmax.xlane.f32.xlu0 %v925
    %v996 = vpop.xlane.xlu0 %995
    %997 = vmax.xlane.f32.xlu0 %v926
    %v998 = vpop.xlane.xlu0 %997
    %999 = vmax.xlane.f32.xlu0 %v927
    %v1000 = vpop.xlane.xlu0 %999
    %1001 = vmax.xlane.f32.xlu0 %v928
    %v1002 = vpop.xlane.xlu0 %1001
    %1003 = vmax.xlane.f32.xlu0 %v929
    %v1004 = vpop.xlane.xlu0 %1003
    %1005 = vmax.xlane.f32.xlu0 %v930
    %v1006 = vpop.xlane.xlu0 %1005
    %1007 = vmax.xlane.f32.xlu0 %v931
    %v1008 = vpop.xlane.xlu0 %1007
    %1009 = vmax.xlane.f32.xlu0 %v932
    %v1010 = vpop.xlane.xlu0 %1009
    %1011 = vmax.xlane.f32.xlu0 %v933
    %v1012 = vpop.xlane.xlu0 %1011
    %1013 = vmax.xlane.f32.xlu0 %v934
    %v1014 = vpop.xlane.xlu0 %1013
    %1015 = vmax.xlane.f32.xlu0 %v935
    %v1016 = vpop.xlane.xlu0 %1015
    %1017 = vmax.xlane.f32.xlu0 %v936
    %v1018 = vpop.xlane.xlu0 %1017
    %1019 = vmax.xlane.f32.xlu0 %v937
    %v1020 = vpop.xlane.xlu0 %1019
    %1021 = vmax.xlane.f32.xlu0 %v938
    %v1022 = vpop.xlane.xlu0 %1021
    %1023 = vmax.xlane.f32.xlu0 %v939
    %v1024 = vpop.xlane.xlu0 %1023
    %1025 = vmax.xlane.f32.xlu0 %v940
    %v1026 = vpop.xlane.xlu0 %1025
    %1027 = vmax.xlane.f32.xlu0 %v941
    %v1028 = vpop.xlane.xlu0 %1027
    %1029 = vmax.xlane.f32.xlu0 %v942
    %v1030 = vpop.xlane.xlu0 %1029
    %1031 = vmax.xlane.f32.xlu0 %v943
    %v1032 = vpop.xlane.xlu0 %1031
    %1033 = vmax.xlane.f32.xlu0 %v944
    %v1034 = vpop.xlane.xlu0 %1033
    %1035 = vmax.xlane.f32.xlu0 %v945
    %v1036 = vpop.xlane.xlu0 %1035
    %1037 = vmax.xlane.f32.xlu0 %v946
    %v1038 = vpop.xlane.xlu0 %1037
    %1039 = vmax.xlane.f32.xlu0 %v947
    %v1040 = vpop.xlane.xlu0 %1039
    %1041 = vmax.xlane.f32.xlu0 %v948
    %v1042 = vpop.xlane.xlu0 %1041
    %1043 = vmax.xlane.f32.xlu0 %v949
    %v1044 = vpop.xlane.xlu0 %1043
    %1045 = vmax.xlane.f32.xlu0 %v950
    %v1046 = vpop.xlane.xlu0 %1045
    %vm1047 = vcmp.ge.f32.partialorder %v919, %v984
    %vm1048 = vcmp.ge.f32.partialorder %v920, %v986
    %vm1049 = vcmp.ge.f32.partialorder %v921, %v988
    %vm1050 = vcmp.ge.f32.partialorder %v922, %v990
    %vm1051 = vcmp.ge.f32.partialorder %v923, %v992
    %vm1052 = vcmp.ge.f32.partialorder %v924, %v994
    %vm1053 = vcmp.ge.f32.partialorder %v925, %v996
    %vm1054 = vcmp.ge.f32.partialorder %v926, %v998
    %vm1055 = vcmp.ge.f32.partialorder %v927, %v1000
    %vm1056 = vcmp.ge.f32.partialorder %v928, %v1002
    %vm1057 = vcmp.ge.f32.partialorder %v929, %v1004
    %vm1058 = vcmp.ge.f32.partialorder %v930, %v1006
    %vm1059 = vcmp.ge.f32.partialorder %v931, %v1008
    %vm1060 = vcmp.ge.f32.partialorder %v932, %v1010
    %vm1061 = vcmp.ge.f32.partialorder %v933, %v1012
    %vm1062 = vcmp.ge.f32.partialorder %v934, %v1014
    %vm1063 = vcmp.ge.f32.partialorder %v935, %v1016
    %vm1064 = vcmp.ge.f32.partialorder %v936, %v1018
    %vm1065 = vcmp.ge.f32.partialorder %v937, %v1020
    %vm1066 = vcmp.ge.f32.partialorder %v938, %v1022
    %vm1067 = vcmp.ge.f32.partialorder %v939, %v1024
    %vm1068 = vcmp.ge.f32.partialorder %v940, %v1026
    %vm1069 = vcmp.ge.f32.partialorder %v941, %v1028
    %vm1070 = vcmp.ge.f32.partialorder %v942, %v1030
    %vm1071 = vcmp.ge.f32.partialorder %v943, %v1032
    %vm1072 = vcmp.ge.f32.partialorder %v944, %v1034
    %vm1073 = vcmp.ge.f32.partialorder %v945, %v1036
    %vm1074 = vcmp.ge.f32.partialorder %v946, %v1038
    %vm1075 = vcmp.ge.f32.partialorder %v947, %v1040
    %vm1076 = vcmp.ge.f32.partialorder %v948, %v1042
    %vm1077 = vcmp.ge.f32.partialorder %v949, %v1044
    %vm1078 = vcmp.ge.f32.partialorder %v950, %v1046
    %v1079 = vsel %vm1047, -2e+20, %v919
    %v1080 = vsel %vm1048, -2e+20, %v920
    %v1081 = vsel %vm1049, -2e+20, %v921
    %v1082 = vsel %vm1050, -2e+20, %v922
    %v1083 = vsel %vm1051, -2e+20, %v923
    %v1084 = vsel %vm1052, -2e+20, %v924
    %v1085 = vsel %vm1053, -2e+20, %v925
    %v1086 = vsel %vm1054, -2e+20, %v926
    %v1087 = vsel %vm1055, -2e+20, %v927
    %v1088 = vsel %vm1056, -2e+20, %v928
    %v1089 = vsel %vm1057, -2e+20, %v929
    %v1090 = vsel %vm1058, -2e+20, %v930
    %v1091 = vsel %vm1059, -2e+20, %v931
    %v1092 = vsel %vm1060, -2e+20, %v932
    %v1093 = vsel %vm1061, -2e+20, %v933
    %v1094 = vsel %vm1062, -2e+20, %v934
    %v1095 = vsel %vm1063, -2e+20, %v935
    %v1096 = vsel %vm1064, -2e+20, %v936
    %v1097 = vsel %vm1065, -2e+20, %v937
    %v1098 = vsel %vm1066, -2e+20, %v938
    %v1099 = vsel %vm1067, -2e+20, %v939
    %v1100 = vsel %vm1068, -2e+20, %v940
    %v1101 = vsel %vm1069, -2e+20, %v941
    %v1102 = vsel %vm1070, -2e+20, %v942
    %v1103 = vsel %vm1071, -2e+20, %v943
    %v1104 = vsel %vm1072, -2e+20, %v944
    %v1105 = vsel %vm1073, -2e+20, %v945
    %v1106 = vsel %vm1074, -2e+20, %v946
    %v1107 = vsel %vm1075, -2e+20, %v947
    %v1108 = vsel %vm1076, -2e+20, %v948
    %v1109 = vsel %vm1077, -2e+20, %v949
    %v1110 = vsel %vm1078, -2e+20, %v950
    %1111 = vmax.xlane.f32.xlu0 %v1079
    %v1112 = vpop.xlane.xlu0 %1111
    %1113 = vmax.xlane.f32.xlu0 %v1080
    %v1114 = vpop.xlane.xlu0 %1113
    %1115 = vmax.xlane.f32.xlu0 %v1081
    %v1116 = vpop.xlane.xlu0 %1115
    %1117 = vmax.xlane.f32.xlu0 %v1082
    %v1118 = vpop.xlane.xlu0 %1117
    %1119 = vmax.xlane.f32.xlu0 %v1083
    %v1120 = vpop.xlane.xlu0 %1119
    %1121 = vmax.xlane.f32.xlu0 %v1084
    %v1122 = vpop.xlane.xlu0 %1121
    %1123 = vmax.xlane.f32.xlu0 %v1085
    %v1124 = vpop.xlane.xlu0 %1123
    %1125 = vmax.xlane.f32.xlu0 %v1086
    %v1126 = vpop.xlane.xlu0 %1125
    %1127 = vmax.xlane.f32.xlu0 %v1087
    %v1128 = vpop.xlane.xlu0 %1127
    %1129 = vmax.xlane.f32.xlu0 %v1088
    %v1130 = vpop.xlane.xlu0 %1129
    %1131 = vmax.xlane.f32.xlu0 %v1089
    %v1132 = vpop.xlane.xlu0 %1131
    %1133 = vmax.xlane.f32.xlu0 %v1090
    %v1134 = vpop.xlane.xlu0 %1133
    %1135 = vmax.xlane.f32.xlu0 %v1091
    %v1136 = vpop.xlane.xlu0 %1135
    %1137 = vmax.xlane.f32.xlu0 %v1092
    %v1138 = vpop.xlane.xlu0 %1137
    %1139 = vmax.xlane.f32.xlu0 %v1093
    %v1140 = vpop.xlane.xlu0 %1139
    %1141 = vmax.xlane.f32.xlu0 %v1094
    %v1142 = vpop.xlane.xlu0 %1141
    %1143 = vmax.xlane.f32.xlu0 %v1095
    %v1144 = vpop.xlane.xlu0 %1143
    %1145 = vmax.xlane.f32.xlu0 %v1096
    %v1146 = vpop.xlane.xlu0 %1145
    %1147 = vmax.xlane.f32.xlu0 %v1097
    %v1148 = vpop.xlane.xlu0 %1147
    %1149 = vmax.xlane.f32.xlu0 %v1098
    %v1150 = vpop.xlane.xlu0 %1149
    %1151 = vmax.xlane.f32.xlu0 %v1099
    %v1152 = vpop.xlane.xlu0 %1151
    %1153 = vmax.xlane.f32.xlu0 %v1100
    %v1154 = vpop.xlane.xlu0 %1153
    %1155 = vmax.xlane.f32.xlu0 %v1101
    %v1156 = vpop.xlane.xlu0 %1155
    %1157 = vmax.xlane.f32.xlu0 %v1102
    %v1158 = vpop.xlane.xlu0 %1157
    %1159 = vmax.xlane.f32.xlu0 %v1103
    %v1160 = vpop.xlane.xlu0 %1159
    %1161 = vmax.xlane.f32.xlu0 %v1104
    %v1162 = vpop.xlane.xlu0 %1161
    %1163 = vmax.xlane.f32.xlu0 %v1105
    %v1164 = vpop.xlane.xlu0 %1163
    %1165 = vmax.xlane.f32.xlu0 %v1106
    %v1166 = vpop.xlane.xlu0 %1165
    %1167 = vmax.xlane.f32.xlu0 %v1107
    %v1168 = vpop.xlane.xlu0 %1167
    %1169 = vmax.xlane.f32.xlu0 %v1108
    %v1170 = vpop.xlane.xlu0 %1169
    %1171 = vmax.xlane.f32.xlu0 %v1109
    %v1172 = vpop.xlane.xlu0 %1171
    %1173 = vmax.xlane.f32.xlu0 %v1110
    %v1174 = vpop.xlane.xlu0 %1173
    %vm1175 = vcmp.ge.f32.partialorder %v1079, %v1112
    %vm1176 = vcmp.ge.f32.partialorder %v1080, %v1114
    %vm1177 = vcmp.ge.f32.partialorder %v1081, %v1116
    %vm1178 = vcmp.ge.f32.partialorder %v1082, %v1118
    %vm1179 = vcmp.ge.f32.partialorder %v1083, %v1120
    %vm1180 = vcmp.ge.f32.partialorder %v1084, %v1122
    %vm1181 = vcmp.ge.f32.partialorder %v1085, %v1124
    %vm1182 = vcmp.ge.f32.partialorder %v1086, %v1126
    %vm1183 = vcmp.ge.f32.partialorder %v1087, %v1128
    %vm1184 = vcmp.ge.f32.partialorder %v1088, %v1130
    %vm1185 = vcmp.ge.f32.partialorder %v1089, %v1132
    %vm1186 = vcmp.ge.f32.partialorder %v1090, %v1134
    %vm1187 = vcmp.ge.f32.partialorder %v1091, %v1136
    %vm1188 = vcmp.ge.f32.partialorder %v1092, %v1138
    %vm1189 = vcmp.ge.f32.partialorder %v1093, %v1140
    %vm1190 = vcmp.ge.f32.partialorder %v1094, %v1142
    %vm1191 = vcmp.ge.f32.partialorder %v1095, %v1144
    %vm1192 = vcmp.ge.f32.partialorder %v1096, %v1146
    %vm1193 = vcmp.ge.f32.partialorder %v1097, %v1148
    %vm1194 = vcmp.ge.f32.partialorder %v1098, %v1150
    %vm1195 = vcmp.ge.f32.partialorder %v1099, %v1152
    %vm1196 = vcmp.ge.f32.partialorder %v1100, %v1154
    %vm1197 = vcmp.ge.f32.partialorder %v1101, %v1156
    %vm1198 = vcmp.ge.f32.partialorder %v1102, %v1158
    %vm1199 = vcmp.ge.f32.partialorder %v1103, %v1160
    %vm1200 = vcmp.ge.f32.partialorder %v1104, %v1162
    %vm1201 = vcmp.ge.f32.partialorder %v1105, %v1164
    %vm1202 = vcmp.ge.f32.partialorder %v1106, %v1166
    %vm1203 = vcmp.ge.f32.partialorder %v1107, %v1168
    %vm1204 = vcmp.ge.f32.partialorder %v1108, %v1170
    %vm1205 = vcmp.ge.f32.partialorder %v1109, %v1172
    %vm1206 = vcmp.ge.f32.partialorder %v1110, %v1174
    %v1207 = vsel %vm1175, -2e+20, %v1079
    %v1208 = vsel %vm1176, -2e+20, %v1080
    %v1209 = vsel %vm1177, -2e+20, %v1081
    %v1210 = vsel %vm1178, -2e+20, %v1082
    %v1211 = vsel %vm1179, -2e+20, %v1083
    %v1212 = vsel %vm1180, -2e+20, %v1084
    %v1213 = vsel %vm1181, -2e+20, %v1085
    %v1214 = vsel %vm1182, -2e+20, %v1086
    %v1215 = vsel %vm1183, -2e+20, %v1087
    %v1216 = vsel %vm1184, -2e+20, %v1088
    %v1217 = vsel %vm1185, -2e+20, %v1089
    %v1218 = vsel %vm1186, -2e+20, %v1090
    %v1219 = vsel %vm1187, -2e+20, %v1091
    %v1220 = vsel %vm1188, -2e+20, %v1092
    %v1221 = vsel %vm1189, -2e+20, %v1093
    %v1222 = vsel %vm1190, -2e+20, %v1094
    %v1223 = vsel %vm1191, -2e+20, %v1095
    %v1224 = vsel %vm1192, -2e+20, %v1096
    %v1225 = vsel %vm1193, -2e+20, %v1097
    %v1226 = vsel %vm1194, -2e+20, %v1098
    %v1227 = vsel %vm1195, -2e+20, %v1099
    %v1228 = vsel %vm1196, -2e+20, %v1100
    %v1229 = vsel %vm1197, -2e+20, %v1101
    %v1230 = vsel %vm1198, -2e+20, %v1102
    %v1231 = vsel %vm1199, -2e+20, %v1103
    %v1232 = vsel %vm1200, -2e+20, %v1104
    %v1233 = vsel %vm1201, -2e+20, %v1105
    %v1234 = vsel %vm1202, -2e+20, %v1106
    %v1235 = vsel %vm1203, -2e+20, %v1107
    %v1236 = vsel %vm1204, -2e+20, %v1108
    %v1237 = vsel %vm1205, -2e+20, %v1109
    %v1238 = vsel %vm1206, -2e+20, %v1110
    %1239 = vmax.xlane.f32.xlu0 %v1207
    %v1240 = vpop.xlane.xlu0 %1239
    %1241 = vmax.xlane.f32.xlu0 %v1208
    %v1242 = vpop.xlane.xlu0 %1241
    %1243 = vmax.xlane.f32.xlu0 %v1209
    %v1244 = vpop.xlane.xlu0 %1243
    %1245 = vmax.xlane.f32.xlu0 %v1210
    %v1246 = vpop.xlane.xlu0 %1245
    %1247 = vmax.xlane.f32.xlu0 %v1211
    %v1248 = vpop.xlane.xlu0 %1247
    %1249 = vmax.xlane.f32.xlu0 %v1212
    %v1250 = vpop.xlane.xlu0 %1249
    %1251 = vmax.xlane.f32.xlu0 %v1213
    %v1252 = vpop.xlane.xlu0 %1251
    %1253 = vmax.xlane.f32.xlu0 %v1214
    %v1254 = vpop.xlane.xlu0 %1253
    %1255 = vmax.xlane.f32.xlu0 %v1215
    %v1256 = vpop.xlane.xlu0 %1255
    %1257 = vmax.xlane.f32.xlu0 %v1216
    %v1258 = vpop.xlane.xlu0 %1257
    %1259 = vmax.xlane.f32.xlu0 %v1217
    %v1260 = vpop.xlane.xlu0 %1259
    %1261 = vmax.xlane.f32.xlu0 %v1218
    %v1262 = vpop.xlane.xlu0 %1261
    %1263 = vmax.xlane.f32.xlu0 %v1219
    %v1264 = vpop.xlane.xlu0 %1263
    %1265 = vmax.xlane.f32.xlu0 %v1220
    %v1266 = vpop.xlane.xlu0 %1265
    %1267 = vmax.xlane.f32.xlu0 %v1221
    %v1268 = vpop.xlane.xlu0 %1267
    %1269 = vmax.xlane.f32.xlu0 %v1222
    %v1270 = vpop.xlane.xlu0 %1269
    %1271 = vmax.xlane.f32.xlu0 %v1223
    %v1272 = vpop.xlane.xlu0 %1271
    %1273 = vmax.xlane.f32.xlu0 %v1224
    %v1274 = vpop.xlane.xlu0 %1273
    %1275 = vmax.xlane.f32.xlu0 %v1225
    %v1276 = vpop.xlane.xlu0 %1275
    %1277 = vmax.xlane.f32.xlu0 %v1226
    %v1278 = vpop.xlane.xlu0 %1277
    %1279 = vmax.xlane.f32.xlu0 %v1227
    %v1280 = vpop.xlane.xlu0 %1279
    %1281 = vmax.xlane.f32.xlu0 %v1228
    %v1282 = vpop.xlane.xlu0 %1281
    %1283 = vmax.xlane.f32.xlu0 %v1229
    %v1284 = vpop.xlane.xlu0 %1283
    %1285 = vmax.xlane.f32.xlu0 %v1230
    %v1286 = vpop.xlane.xlu0 %1285
    %1287 = vmax.xlane.f32.xlu0 %v1231
    %v1288 = vpop.xlane.xlu0 %1287
    %1289 = vmax.xlane.f32.xlu0 %v1232
    %v1290 = vpop.xlane.xlu0 %1289
    %1291 = vmax.xlane.f32.xlu0 %v1233
    %v1292 = vpop.xlane.xlu0 %1291
    %1293 = vmax.xlane.f32.xlu0 %v1234
    %v1294 = vpop.xlane.xlu0 %1293
    %1295 = vmax.xlane.f32.xlu0 %v1235
    %v1296 = vpop.xlane.xlu0 %1295
    %1297 = vmax.xlane.f32.xlu0 %v1236
    %v1298 = vpop.xlane.xlu0 %1297
    %1299 = vmax.xlane.f32.xlu0 %v1237
    %v1300 = vpop.xlane.xlu0 %1299
    %1301 = vmax.xlane.f32.xlu0 %v1238
    %v1302 = vpop.xlane.xlu0 %1301
    %vm1303 = vcmp.ge.f32.partialorder %v1207, %v1240
    %vm1304 = vcmp.ge.f32.partialorder %v1208, %v1242
    %vm1305 = vcmp.ge.f32.partialorder %v1209, %v1244
    %vm1306 = vcmp.ge.f32.partialorder %v1210, %v1246
    %vm1307 = vcmp.ge.f32.partialorder %v1211, %v1248
    %vm1308 = vcmp.ge.f32.partialorder %v1212, %v1250
    %vm1309 = vcmp.ge.f32.partialorder %v1213, %v1252
    %vm1310 = vcmp.ge.f32.partialorder %v1214, %v1254
    %vm1311 = vcmp.ge.f32.partialorder %v1215, %v1256
    %vm1312 = vcmp.ge.f32.partialorder %v1216, %v1258
    %vm1313 = vcmp.ge.f32.partialorder %v1217, %v1260
    %vm1314 = vcmp.ge.f32.partialorder %v1218, %v1262
    %vm1315 = vcmp.ge.f32.partialorder %v1219, %v1264
    %vm1316 = vcmp.ge.f32.partialorder %v1220, %v1266
    %vm1317 = vcmp.ge.f32.partialorder %v1221, %v1268
    %vm1318 = vcmp.ge.f32.partialorder %v1222, %v1270
    %vm1319 = vcmp.ge.f32.partialorder %v1223, %v1272
    %vm1320 = vcmp.ge.f32.partialorder %v1224, %v1274
    %vm1321 = vcmp.ge.f32.partialorder %v1225, %v1276
    %vm1322 = vcmp.ge.f32.partialorder %v1226, %v1278
    %vm1323 = vcmp.ge.f32.partialorder %v1227, %v1280
    %vm1324 = vcmp.ge.f32.partialorder %v1228, %v1282
    %vm1325 = vcmp.ge.f32.partialorder %v1229, %v1284
    %vm1326 = vcmp.ge.f32.partialorder %v1230, %v1286
    %vm1327 = vcmp.ge.f32.partialorder %v1231, %v1288
    %vm1328 = vcmp.ge.f32.partialorder %v1232, %v1290
    %vm1329 = vcmp.ge.f32.partialorder %v1233, %v1292
    %vm1330 = vcmp.ge.f32.partialorder %v1234, %v1294
    %vm1331 = vcmp.ge.f32.partialorder %v1235, %v1296
    %vm1332 = vcmp.ge.f32.partialorder %v1236, %v1298
    %vm1333 = vcmp.ge.f32.partialorder %v1237, %v1300
    %vm1334 = vcmp.ge.f32.partialorder %v1238, %v1302
    %v1335 = vsel %vm1303, -2e+20, %v1207
    %v1336 = vsel %vm1304, -2e+20, %v1208
    %v1337 = vsel %vm1305, -2e+20, %v1209
    %v1338 = vsel %vm1306, -2e+20, %v1210
    %v1339 = vsel %vm1307, -2e+20, %v1211
    %v1340 = vsel %vm1308, -2e+20, %v1212
    %v1341 = vsel %vm1309, -2e+20, %v1213
    %v1342 = vsel %vm1310, -2e+20, %v1214
    %v1343 = vsel %vm1311, -2e+20, %v1215
    %v1344 = vsel %vm1312, -2e+20, %v1216
    %v1345 = vsel %vm1313, -2e+20, %v1217
    %v1346 = vsel %vm1314, -2e+20, %v1218
    %v1347 = vsel %vm1315, -2e+20, %v1219
    %v1348 = vsel %vm1316, -2e+20, %v1220
    %v1349 = vsel %vm1317, -2e+20, %v1221
    %v1350 = vsel %vm1318, -2e+20, %v1222
    %v1351 = vsel %vm1319, -2e+20, %v1223
    %v1352 = vsel %vm1320, -2e+20, %v1224
    %v1353 = vsel %vm1321, -2e+20, %v1225
    %v1354 = vsel %vm1322, -2e+20, %v1226
    %v1355 = vsel %vm1323, -2e+20, %v1227
    %v1356 = vsel %vm1324, -2e+20, %v1228
    %v1357 = vsel %vm1325, -2e+20, %v1229
    %v1358 = vsel %vm1326, -2e+20, %v1230
    %v1359 = vsel %vm1327, -2e+20, %v1231
    %v1360 = vsel %vm1328, -2e+20, %v1232
    %v1361 = vsel %vm1329, -2e+20, %v1233
    %v1362 = vsel %vm1330, -2e+20, %v1234
    %v1363 = vsel %vm1331, -2e+20, %v1235
    %v1364 = vsel %vm1332, -2e+20, %v1236
    %v1365 = vsel %vm1333, -2e+20, %v1237
    %v1366 = vsel %vm1334, -2e+20, %v1238
    %1367 = vmax.xlane.f32.xlu0 %v1335
    %v1368 = vpop.xlane.xlu0 %1367
    %1369 = vmax.xlane.f32.xlu0 %v1336
    %v1370 = vpop.xlane.xlu0 %1369
    %1371 = vmax.xlane.f32.xlu0 %v1337
    %v1372 = vpop.xlane.xlu0 %1371
    %1373 = vmax.xlane.f32.xlu0 %v1338
    %v1374 = vpop.xlane.xlu0 %1373
    %1375 = vmax.xlane.f32.xlu0 %v1339
    %v1376 = vpop.xlane.xlu0 %1375
    %1377 = vmax.xlane.f32.xlu0 %v1340
    %v1378 = vpop.xlane.xlu0 %1377
    %1379 = vmax.xlane.f32.xlu0 %v1341
    %v1380 = vpop.xlane.xlu0 %1379
    %1381 = vmax.xlane.f32.xlu0 %v1342
    %v1382 = vpop.xlane.xlu0 %1381
    %1383 = vmax.xlane.f32.xlu0 %v1343
    %v1384 = vpop.xlane.xlu0 %1383
    %1385 = vmax.xlane.f32.xlu0 %v1344
    %v1386 = vpop.xlane.xlu0 %1385
    %1387 = vmax.xlane.f32.xlu0 %v1345
    %v1388 = vpop.xlane.xlu0 %1387
    %1389 = vmax.xlane.f32.xlu0 %v1346
    %v1390 = vpop.xlane.xlu0 %1389
    %1391 = vmax.xlane.f32.xlu0 %v1347
    %v1392 = vpop.xlane.xlu0 %1391
    %1393 = vmax.xlane.f32.xlu0 %v1348
    %v1394 = vpop.xlane.xlu0 %1393
    %1395 = vmax.xlane.f32.xlu0 %v1349
    %v1396 = vpop.xlane.xlu0 %1395
    %1397 = vmax.xlane.f32.xlu0 %v1350
    %v1398 = vpop.xlane.xlu0 %1397
    %1399 = vmax.xlane.f32.xlu0 %v1351
    %v1400 = vpop.xlane.xlu0 %1399
    %1401 = vmax.xlane.f32.xlu0 %v1352
    %v1402 = vpop.xlane.xlu0 %1401
    %1403 = vmax.xlane.f32.xlu0 %v1353
    %v1404 = vpop.xlane.xlu0 %1403
    %1405 = vmax.xlane.f32.xlu0 %v1354
    %v1406 = vpop.xlane.xlu0 %1405
    %1407 = vmax.xlane.f32.xlu0 %v1355
    %v1408 = vpop.xlane.xlu0 %1407
    %1409 = vmax.xlane.f32.xlu0 %v1356
    %v1410 = vpop.xlane.xlu0 %1409
    %1411 = vmax.xlane.f32.xlu0 %v1357
    %v1412 = vpop.xlane.xlu0 %1411
    %1413 = vmax.xlane.f32.xlu0 %v1358
    %v1414 = vpop.xlane.xlu0 %1413
    %1415 = vmax.xlane.f32.xlu0 %v1359
    %v1416 = vpop.xlane.xlu0 %1415
    %1417 = vmax.xlane.f32.xlu0 %v1360
    %v1418 = vpop.xlane.xlu0 %1417
    %1419 = vmax.xlane.f32.xlu0 %v1361
    %v1420 = vpop.xlane.xlu0 %1419
    %1421 = vmax.xlane.f32.xlu0 %v1362
    %v1422 = vpop.xlane.xlu0 %1421
    %1423 = vmax.xlane.f32.xlu0 %v1363
    %v1424 = vpop.xlane.xlu0 %1423
    %1425 = vmax.xlane.f32.xlu0 %v1364
    %v1426 = vpop.xlane.xlu0 %1425
    %1427 = vmax.xlane.f32.xlu0 %v1365
    %v1428 = vpop.xlane.xlu0 %1427
    %1429 = vmax.xlane.f32.xlu0 %v1366
    %v1430 = vpop.xlane.xlu0 %1429
    %vm1431 = vcmp.ge.f32.partialorder %v1335, %v1368
    %vm1432 = vcmp.ge.f32.partialorder %v1336, %v1370
    %vm1433 = vcmp.ge.f32.partialorder %v1337, %v1372
    %vm1434 = vcmp.ge.f32.partialorder %v1338, %v1374
    %vm1435 = vcmp.ge.f32.partialorder %v1339, %v1376
    %vm1436 = vcmp.ge.f32.partialorder %v1340, %v1378
    %vm1437 = vcmp.ge.f32.partialorder %v1341, %v1380
    %vm1438 = vcmp.ge.f32.partialorder %v1342, %v1382
    %vm1439 = vcmp.ge.f32.partialorder %v1343, %v1384
    %vm1440 = vcmp.ge.f32.partialorder %v1344, %v1386
    %vm1441 = vcmp.ge.f32.partialorder %v1345, %v1388
    %vm1442 = vcmp.ge.f32.partialorder %v1346, %v1390
    %vm1443 = vcmp.ge.f32.partialorder %v1347, %v1392
    %vm1444 = vcmp.ge.f32.partialorder %v1348, %v1394
    %vm1445 = vcmp.ge.f32.partialorder %v1349, %v1396
    %vm1446 = vcmp.ge.f32.partialorder %v1350, %v1398
    %vm1447 = vcmp.ge.f32.partialorder %v1351, %v1400
    %vm1448 = vcmp.ge.f32.partialorder %v1352, %v1402
    %vm1449 = vcmp.ge.f32.partialorder %v1353, %v1404
    %vm1450 = vcmp.ge.f32.partialorder %v1354, %v1406
    %vm1451 = vcmp.ge.f32.partialorder %v1355, %v1408
    %vm1452 = vcmp.ge.f32.partialorder %v1356, %v1410
    %vm1453 = vcmp.ge.f32.partialorder %v1357, %v1412
    %vm1454 = vcmp.ge.f32.partialorder %v1358, %v1414
    %vm1455 = vcmp.ge.f32.partialorder %v1359, %v1416
    %vm1456 = vcmp.ge.f32.partialorder %v1360, %v1418
    %vm1457 = vcmp.ge.f32.partialorder %v1361, %v1420
    %vm1458 = vcmp.ge.f32.partialorder %v1362, %v1422
    %vm1459 = vcmp.ge.f32.partialorder %v1363, %v1424
    %vm1460 = vcmp.ge.f32.partialorder %v1364, %v1426
    %vm1461 = vcmp.ge.f32.partialorder %v1365, %v1428
    %vm1462 = vcmp.ge.f32.partialorder %v1366, %v1430
    %v1463 = vsel %vm1431, -2e+20, %v1335
    %v1464 = vsel %vm1432, -2e+20, %v1336
    %v1465 = vsel %vm1433, -2e+20, %v1337
    %v1466 = vsel %vm1434, -2e+20, %v1338
    %v1467 = vsel %vm1435, -2e+20, %v1339
    %v1468 = vsel %vm1436, -2e+20, %v1340
    %v1469 = vsel %vm1437, -2e+20, %v1341
    %v1470 = vsel %vm1438, -2e+20, %v1342
    %v1471 = vsel %vm1439, -2e+20, %v1343
    %v1472 = vsel %vm1440, -2e+20, %v1344
    %v1473 = vsel %vm1441, -2e+20, %v1345
    %v1474 = vsel %vm1442, -2e+20, %v1346
    %v1475 = vsel %vm1443, -2e+20, %v1347
    %v1476 = vsel %vm1444, -2e+20, %v1348
    %v1477 = vsel %vm1445, -2e+20, %v1349
    %v1478 = vsel %vm1446, -2e+20, %v1350
    %v1479 = vsel %vm1447, -2e+20, %v1351
    %v1480 = vsel %vm1448, -2e+20, %v1352
    %v1481 = vsel %vm1449, -2e+20, %v1353
    %v1482 = vsel %vm1450, -2e+20, %v1354
    %v1483 = vsel %vm1451, -2e+20, %v1355
    %v1484 = vsel %vm1452, -2e+20, %v1356
    %v1485 = vsel %vm1453, -2e+20, %v1357
    %v1486 = vsel %vm1454, -2e+20, %v1358
    %v1487 = vsel %vm1455, -2e+20, %v1359
    %v1488 = vsel %vm1456, -2e+20, %v1360
    %v1489 = vsel %vm1457, -2e+20, %v1361
    %v1490 = vsel %vm1458, -2e+20, %v1362
    %v1491 = vsel %vm1459, -2e+20, %v1363
    %v1492 = vsel %vm1460, -2e+20, %v1364
    %v1493 = vsel %vm1461, -2e+20, %v1365
    %v1494 = vsel %vm1462, -2e+20, %v1366
    %1495 = vmax.xlane.f32.xlu0 %v1463
    %v1496 = vpop.xlane.xlu0 %1495
    %1497 = vmax.xlane.f32.xlu0 %v1464
    %v1498 = vpop.xlane.xlu0 %1497
    %1499 = vmax.xlane.f32.xlu0 %v1465
    %v1500 = vpop.xlane.xlu0 %1499
    %1501 = vmax.xlane.f32.xlu0 %v1466
    %v1502 = vpop.xlane.xlu0 %1501
    %1503 = vmax.xlane.f32.xlu0 %v1467
    %v1504 = vpop.xlane.xlu0 %1503
    %1505 = vmax.xlane.f32.xlu0 %v1468
    %v1506 = vpop.xlane.xlu0 %1505
    %1507 = vmax.xlane.f32.xlu0 %v1469
    %v1508 = vpop.xlane.xlu0 %1507
    %1509 = vmax.xlane.f32.xlu0 %v1470
    %v1510 = vpop.xlane.xlu0 %1509
    %1511 = vmax.xlane.f32.xlu0 %v1471
    %v1512 = vpop.xlane.xlu0 %1511
    %1513 = vmax.xlane.f32.xlu0 %v1472
    %v1514 = vpop.xlane.xlu0 %1513
    %1515 = vmax.xlane.f32.xlu0 %v1473
    %v1516 = vpop.xlane.xlu0 %1515
    %1517 = vmax.xlane.f32.xlu0 %v1474
    %v1518 = vpop.xlane.xlu0 %1517
    %1519 = vmax.xlane.f32.xlu0 %v1475
    %v1520 = vpop.xlane.xlu0 %1519
    %1521 = vmax.xlane.f32.xlu0 %v1476
    %v1522 = vpop.xlane.xlu0 %1521
    %1523 = vmax.xlane.f32.xlu0 %v1477
    %v1524 = vpop.xlane.xlu0 %1523
    %1525 = vmax.xlane.f32.xlu0 %v1478
    %v1526 = vpop.xlane.xlu0 %1525
    %1527 = vmax.xlane.f32.xlu0 %v1479
    %v1528 = vpop.xlane.xlu0 %1527
    %1529 = vmax.xlane.f32.xlu0 %v1480
    %v1530 = vpop.xlane.xlu0 %1529
    %1531 = vmax.xlane.f32.xlu0 %v1481
    %v1532 = vpop.xlane.xlu0 %1531
    %1533 = vmax.xlane.f32.xlu0 %v1482
    %v1534 = vpop.xlane.xlu0 %1533
    %1535 = vmax.xlane.f32.xlu0 %v1483
    %v1536 = vpop.xlane.xlu0 %1535
    %1537 = vmax.xlane.f32.xlu0 %v1484
    %v1538 = vpop.xlane.xlu0 %1537
    %1539 = vmax.xlane.f32.xlu0 %v1485
    %v1540 = vpop.xlane.xlu0 %1539
    %1541 = vmax.xlane.f32.xlu0 %v1486
    %v1542 = vpop.xlane.xlu0 %1541
    %1543 = vmax.xlane.f32.xlu0 %v1487
    %v1544 = vpop.xlane.xlu0 %1543
    %1545 = vmax.xlane.f32.xlu0 %v1488
    %v1546 = vpop.xlane.xlu0 %1545
    %1547 = vmax.xlane.f32.xlu0 %v1489
    %v1548 = vpop.xlane.xlu0 %1547
    %1549 = vmax.xlane.f32.xlu0 %v1490
    %v1550 = vpop.xlane.xlu0 %1549
    %1551 = vmax.xlane.f32.xlu0 %v1491
    %v1552 = vpop.xlane.xlu0 %1551
    %1553 = vmax.xlane.f32.xlu0 %v1492
    %v1554 = vpop.xlane.xlu0 %1553
    %1555 = vmax.xlane.f32.xlu0 %v1493
    %v1556 = vpop.xlane.xlu0 %1555
    %1557 = vmax.xlane.f32.xlu0 %v1494
    %v1558 = vpop.xlane.xlu0 %1557
    %v1559 = vld [vmem:[#allocation2] sm:$0xff]
    %v1560 = vld [vmem:[#allocation2 + $0x8] sm:$0xff]
    %v1561 = vld [vmem:[#allocation2 + $0x10] sm:$0xff]
    %v1562 = vld [vmem:[#allocation2 + $0x18] sm:$0xff]
    %v1563 = vld [vmem:[#allocation2 + $0x20] sm:$0xff]
    %v1564 = vld [vmem:[#allocation2 + $0x28] sm:$0xff]
    %v1565 = vld [vmem:[#allocation2 + $0x30] sm:$0xff]
    %v1566 = vld [vmem:[#allocation2 + $0x38] sm:$0xff]
    %v1567 = vld [vmem:[#allocation2 + $0x40] sm:$0xff]
    %v1568 = vld [vmem:[#allocation2 + $0x48] sm:$0xff]
    %v1569 = vld [vmem:[#allocation2 + $0x50] sm:$0xff]
    %v1570 = vld [vmem:[#allocation2 + $0x58] sm:$0xff]
    %v1571 = vld [vmem:[#allocation2 + $0x60] sm:$0xff]
    %v1572 = vld [vmem:[#allocation2 + $0x68] sm:$0xff]
    %v1573 = vld [vmem:[#allocation2 + $0x70] sm:$0xff]
    %v1574 = vld [vmem:[#allocation2 + $0x78] sm:$0xff]
    %v1575 = vld [vmem:[#allocation2 + $0x80] sm:$0xff]
    %v1576 = vld [vmem:[#allocation2 + $0x88] sm:$0xff]
    %v1577 = vld [vmem:[#allocation2 + $0x90] sm:$0xff]
    %v1578 = vld [vmem:[#allocation2 + $0x98] sm:$0xff]
    %v1579 = vld [vmem:[#allocation2 + $0xa0] sm:$0xff]
    %v1580 = vld [vmem:[#allocation2 + $0xa8] sm:$0xff]
    %v1581 = vld [vmem:[#allocation2 + $0xb0] sm:$0xff]
    %v1582 = vld [vmem:[#allocation2 + $0xb8] sm:$0xff]
    %v1583 = vld [vmem:[#allocation2 + $0xc0] sm:$0xff]
    %v1584 = vld [vmem:[#allocation2 + $0xc8] sm:$0xff]
    %v1585 = vld [vmem:[#allocation2 + $0xd0] sm:$0xff]
    %v1586 = vld [vmem:[#allocation2 + $0xd8] sm:$0xff]
    %v1587 = vld [vmem:[#allocation2 + $0xe0] sm:$0xff]
    %v1588 = vld [vmem:[#allocation2 + $0xe8] sm:$0xff]
    %v1589 = vld [vmem:[#allocation2 + $0xf0] sm:$0xff]
    %v1590 = vld [vmem:[#allocation2 + $0xf8] sm:$0xff]
    %vm1591 = vcmp.ge.f32.partialorder %v1559, %v1496
    %vm1592 = vcmp.ge.f32.partialorder %v1560, %v1498
    %vm1593 = vcmp.ge.f32.partialorder %v1561, %v1500
    %vm1594 = vcmp.ge.f32.partialorder %v1562, %v1502
    %vm1595 = vcmp.ge.f32.partialorder %v1563, %v1504
    %vm1596 = vcmp.ge.f32.partialorder %v1564, %v1506
    %vm1597 = vcmp.ge.f32.partialorder %v1565, %v1508
    %vm1598 = vcmp.ge.f32.partialorder %v1566, %v1510
    %vm1599 = vcmp.ge.f32.partialorder %v1567, %v1512
    %vm1600 = vcmp.ge.f32.partialorder %v1568, %v1514
    %vm1601 = vcmp.ge.f32.partialorder %v1569, %v1516
    %vm1602 = vcmp.ge.f32.partialorder %v1570, %v1518
    %vm1603 = vcmp.ge.f32.partialorder %v1571, %v1520
    %vm1604 = vcmp.ge.f32.partialorder %v1572, %v1522
    %vm1605 = vcmp.ge.f32.partialorder %v1573, %v1524
    %vm1606 = vcmp.ge.f32.partialorder %v1574, %v1526
    %vm1607 = vcmp.ge.f32.partialorder %v1575, %v1528
    %vm1608 = vcmp.ge.f32.partialorder %v1576, %v1530
    %vm1609 = vcmp.ge.f32.partialorder %v1577, %v1532
    %vm1610 = vcmp.ge.f32.partialorder %v1578, %v1534
    %vm1611 = vcmp.ge.f32.partialorder %v1579, %v1536
    %vm1612 = vcmp.ge.f32.partialorder %v1580, %v1538
    %vm1613 = vcmp.ge.f32.partialorder %v1581, %v1540
    %vm1614 = vcmp.ge.f32.partialorder %v1582, %v1542
    %vm1615 = vcmp.ge.f32.partialorder %v1583, %v1544
    %vm1616 = vcmp.ge.f32.partialorder %v1584, %v1546
    %vm1617 = vcmp.ge.f32.partialorder %v1585, %v1548
    %vm1618 = vcmp.ge.f32.partialorder %v1586, %v1550
    %vm1619 = vcmp.ge.f32.partialorder %v1587, %v1552
    %vm1620 = vcmp.ge.f32.partialorder %v1588, %v1554
    %vm1621 = vcmp.ge.f32.partialorder %v1589, %v1556
    %vm1622 = vcmp.ge.f32.partialorder %v1590, %v1558
    %v1623 = vsel %vm1591, %v1559, -1e+20
    %v1624 = vsel %vm1592, %v1560, -1e+20
    %v1625 = vsel %vm1593, %v1561, -1e+20
    %v1626 = vsel %vm1594, %v1562, -1e+20
    %v1627 = vsel %vm1595, %v1563, -1e+20
    %v1628 = vsel %vm1596, %v1564, -1e+20
    %v1629 = vsel %vm1597, %v1565, -1e+20
    %v1630 = vsel %vm1598, %v1566, -1e+20
    %v1631 = vsel %vm1599, %v1567, -1e+20
    %v1632 = vsel %vm1600, %v1568, -1e+20
    %v1633 = vsel %vm1601, %v1569, -1e+20
    %v1634 = vsel %vm1602, %v1570, -1e+20
    %v1635 = vsel %vm1603, %v1571, -1e+20
    %v1636 = vsel %vm1604, %v1572, -1e+20
    %v1637 = vsel %vm1605, %v1573, -1e+20
    %v1638 = vsel %vm1606, %v1574, -1e+20
    %v1639 = vsel %vm1607, %v1575, -1e+20
    %v1640 = vsel %vm1608, %v1576, -1e+20
    %v1641 = vsel %vm1609, %v1577, -1e+20
    %v1642 = vsel %vm1610, %v1578, -1e+20
    %v1643 = vsel %vm1611, %v1579, -1e+20
    %v1644 = vsel %vm1612, %v1580, -1e+20
    %v1645 = vsel %vm1613, %v1581, -1e+20
    %v1646 = vsel %vm1614, %v1582, -1e+20
    %v1647 = vsel %vm1615, %v1583, -1e+20
    %v1648 = vsel %vm1616, %v1584, -1e+20
    %v1649 = vsel %vm1617, %v1585, -1e+20
    %v1650 = vsel %vm1618, %v1586, -1e+20
    %v1651 = vsel %vm1619, %v1587, -1e+20
    %v1652 = vsel %vm1620, %v1588, -1e+20
    %v1653 = vsel %vm1621, %v1589, -1e+20
    %v1654 = vsel %vm1622, %v1590, -1e+20
    %1655 = vst [vmem:[#allocation2] sm:$0xff] %v1623
    %1656 = vst [vmem:[#allocation2 + $0x8] sm:$0xff] %v1624
    %1657 = vst [vmem:[#allocation2 + $0x10] sm:$0xff] %v1625
    %1658 = vst [vmem:[#allocation2 + $0x18] sm:$0xff] %v1626
    %1659 = vst [vmem:[#allocation2 + $0x20] sm:$0xff] %v1627
    %1660 = vst [vmem:[#allocation2 + $0x28] sm:$0xff] %v1628
    %1661 = vst [vmem:[#allocation2 + $0x30] sm:$0xff] %v1629
    %1662 = vst [vmem:[#allocation2 + $0x38] sm:$0xff] %v1630
    %1663 = vst [vmem:[#allocation2 + $0x40] sm:$0xff] %v1631
    %1664 = vst [vmem:[#allocation2 + $0x48] sm:$0xff] %v1632
    %1665 = vst [vmem:[#allocation2 + $0x50] sm:$0xff] %v1633
    %1666 = vst [vmem:[#allocation2 + $0x58] sm:$0xff] %v1634
    %1667 = vst [vmem:[#allocation2 + $0x60] sm:$0xff] %v1635
    %1668 = vst [vmem:[#allocation2 + $0x68] sm:$0xff] %v1636
    %1669 = vst [vmem:[#allocation2 + $0x70] sm:$0xff] %v1637
    %1670 = vst [vmem:[#allocation2 + $0x78] sm:$0xff] %v1638
    %1671 = vst [vmem:[#allocation2 + $0x80] sm:$0xff] %v1639
    %1672 = vst [vmem:[#allocation2 + $0x88] sm:$0xff] %v1640
    %1673 = vst [vmem:[#allocation2 + $0x90] sm:$0xff] %v1641
    %1674 = vst [vmem:[#allocation2 + $0x98] sm:$0xff] %v1642
    %1675 = vst [vmem:[#allocation2 + $0xa0] sm:$0xff] %v1643
    %1676 = vst [vmem:[#allocation2 + $0xa8] sm:$0xff] %v1644
    %1677 = vst [vmem:[#allocation2 + $0xb0] sm:$0xff] %v1645
    %1678 = vst [vmem:[#allocation2 + $0xb8] sm:$0xff] %v1646
    %1679 = vst [vmem:[#allocation2 + $0xc0] sm:$0xff] %v1647
    %1680 = vst [vmem:[#allocation2 + $0xc8] sm:$0xff] %v1648
    %1681 = vst [vmem:[#allocation2 + $0xd0] sm:$0xff] %v1649
    %1682 = vst [vmem:[#allocation2 + $0xd8] sm:$0xff] %v1650
    %1683 = vst [vmem:[#allocation2 + $0xe0] sm:$0xff] %v1651
    %1684 = vst [vmem:[#allocation2 + $0xe8] sm:$0xff] %v1652
    %1685 = vst [vmem:[#allocation2 + $0xf0] sm:$0xff] %v1653
    %1686 = vst [vmem:[#allocation2 + $0xf8] sm:$0xff] %v1654
    // Predicated region
    $region18: #{tpu_custom_call.1} parent=1 // pred_check
      _
    $region19: #{tpu_custom_call.1} parent=1 // pred_check_branch
      %1688 = sbr.rel (0) target = $region21
    $region20: #{tpu_custom_call.1} parent=1 // pred_region
      %s1690 = ssub.s32 4096, 4096
      %1691 = vsyncadd [#allocation3], %s1690
      %s1692 = sshll.u32 [#allocation2], 4
      %s1693 = int_to_ptr.vmem [resolvable:$true] %s1692
      %1698 = dma.vmem_to_hbm [thread:$0]  %s1693, 4096, %s4, [#allocation3], 128, 128, 8
    $region21: #{tpu_custom_call.1} parent=1 // pred_fallthru
      _
    // Predicated region
    $region22: #{tpu_custom_call.1} parent=1 // pred_check
      _
    $region23: #{tpu_custom_call.1} parent=1 // pred_check_branch
      %1700 = sbr.rel (0) target = $region25
    $region24: #{tpu_custom_call.1} parent=1 // pred_region
      %1701 = dma.done [#allocation3], 4096
    $region25: #{tpu_custom_call.1} parent=1 // pred_fallthru
      _
    %1702 = vsyncpa [#allocation3], 1

</llo_original>
